<compile_context>
chip_gen: v7x
topology: tpu7x:2x2x1
jax: 0.10.0
libtpu: 0.0.40
codegen_flags: <defaults>
</compile_context>

<pallas_src>
import numpy as np
import jax
import jax.numpy as jnp
from jax.experimental import pallas as pl
from jax.experimental.pallas import tpu as pltpu


# ---------------------------------------------------------------------------
# Host-side (shape-only) bilinear interpolation factors.
# align_corners=False matches current PyTorch F.upsample/interpolate defaults.
# TODO(synk): very old PyTorch (<=0.3) bilinear upsample used align_corners=True;
# pass align_corners=True here if parity with that era is required.
# ---------------------------------------------------------------------------
def _bilinear_taps(out_size: int, in_size: int, align_corners: bool = False):
    """Per output position: left source index i0 and right-tap weight w1."""
    if out_size == in_size:
        return (np.arange(out_size, dtype=np.int32),
                np.zeros(out_size, dtype=np.float32))
    dst = np.arange(out_size, dtype=np.float64)
    if align_corners:
        src = dst * ((in_size - 1) / (out_size - 1)) if out_size > 1 else np.zeros_like(dst)
    else:
        src = (dst + 0.5) * (in_size / out_size) - 0.5
        src = np.maximum(src, 0.0)
    i0 = np.clip(np.floor(src).astype(np.int64), 0, in_size - 1)
    w1 = (src - i0).astype(np.float32)
    return i0.astype(np.int32), w1


def _dense_interp_matrix(out_size: int, in_size: int, align_corners: bool = False):
    i0, w1 = _bilinear_taps(out_size, in_size, align_corners)
    i1 = np.minimum(i0 + 1, in_size - 1)
    M = np.zeros((out_size, in_size), dtype=np.float32)
    M[np.arange(out_size), i0] += 1.0 - w1
    M[np.arange(out_size), i1] += w1
    return M


def _pick_tile_rows(H: int, W: int, max_lanes: int = 4096) -> int:
    divisors = [th for th in range(1, H + 1) if H % th == 0]
    fits = [th for th in divisors if th * W <= max_lanes] or [1]
    dense = [th for th in fits if (th * W) % 128 == 0]
    return max(dense) if dense else max(fits)


# ---------------------------------------------------------------------------
# Kernel: one grid step per (batch, row-tile).
# ---------------------------------------------------------------------------
def _make_kernel(Cin, Cg, Cint, W, Hg, Wg, TH):
    THW = TH * W

    def kernel(i0_ref, w1_ref, psw_ref, psb_ref,          # scalar-prefetch (SMEM)
               x_ref, g_ref, tw_ref, pw_ref, rwT_ref,     # inputs (VMEM)
               y_ref, s_ref,                              # outputs (VMEM)
               phiw_scr, phiup_scr):                      # VMEM scratch
        t = pl.program_id(1)
        xb = x_ref[0]                                     # (Cin, TH*W), lanes = spatial

        # theta(x): 1x1 conv as a single MXU matmul.
        theta_x = jnp.dot(tw_ref[...], xb,
                          preferred_element_type=jnp.float32)            # (Cint, THW)

        # phi(g): 1x1 conv on the low-resolution gate.
        phi_g = jnp.dot(pw_ref[...], g_ref[0],
                        preferred_element_type=jnp.float32)              # (Cint, Hg*Wg)

        # Separable bilinear upsample, width first: for every gate row hg,
        # (Cint, Wg) @ (Wg, W) -> (Cint, W), cached in scratch for row gathers.
        for hg in range(Hg):
            phiw_scr[hg] = jnp.dot(phi_g[:, hg * Wg:(hg + 1) * Wg], rwT_ref[...],
                                   preferred_element_type=jnp.float32)   # (Cint, W)

        # Height: exact 2-tap bilinear blend of the two neighbouring gate rows
        # (indices/weights are shape-only, read from SMEM).  Assembled into a
        # (Cint, THW) scratch so all following ops are bulk and lane-dense.
        for h in range(TH):
            row = t * TH + h
            hg0 = i0_ref[row]
            hg1 = jnp.minimum(hg0 + 1, Hg - 1)
            a1 = w1_ref[row]
            a0 = 1.0 - a1
            phiup_scr[:, h * W:(h + 1) * W] = a0 * phiw_scr[hg0] + a1 * phiw_scr[hg1]

        # f = relu(theta_x + phi_up)
        f = jnp.maximum(theta_x + phiup_scr[...], 0.0)                   # (Cint, THW)

        # psi(f): single-channel 1x1 conv as a VPU multiply-add over Cint
        # channel rows (avoids an N=1 MXU matmul); bias from SMEM.
        psi = psb_ref[0] + psw_ref[0] * f[0, :]
        for c in range(1, Cint):
            psi = psi + psw_ref[c] * f[c, :]
        sig = jax.nn.sigmoid(psi)                                        # (THW,)

        # Second upsample is size-preserving and W is identity in this module.
        s_ref[0] = sig[None, :]                                          # (1, THW)
        y_ref[0] = sig * xb                                              # (Cin, THW)

    return kernel


# ---------------------------------------------------------------------------
# Wrapper
# ---------------------------------------------------------------------------
def grid_attention_block_2d(x_nchw, g_nchw, theta_w, phi_w, psi_w, psi_b,
                            *, tile_rows=None, align_corners=False):
    """x: (B, Cin, H, W); g: (B, Cg, Hg, Wg).
    theta_w: (Cint, Cin), phi_w: (Cint, Cg), psi_w: (Cint,), psi_b: scalar.
    Returns (W_y, sigm) in NCHW."""
    B, Cin, H, W = x_nchw.shape
    Bg, Cg, Hg, Wg = g_nchw.shape
    assert B == Bg
    Cint = theta_w.shape[0]
    HW, HgWg = H * W, Hg * Wg

    TH = tile_rows if tile_rows is not None else _pick_tile_rows(H, W)
    assert H % TH == 0, "tile_rows must divide H"
    nT = H // TH
    THW = TH * W

    # Free views only -- keep native NCHW, no HBM transposes.
    x_flat = x_nchw.reshape(B, Cin, HW).astype(jnp.float32)
    g_flat = g_nchw.reshape(B, Cg, HgWg).astype(jnp.float32)

    # Separable upsample factors.
    row_i0_np, row_w1_np = _bilinear_taps(H, Hg, align_corners)
    rwT = jnp.asarray(_dense_interp_matrix(W, Wg, align_corners).T)      # (Wg, W)
    row_i0 = jnp.asarray(row_i0_np, dtype=jnp.int32)                     # (H,)
    row_w1 = jnp.asarray(row_w1_np, dtype=jnp.float32)                   # (H,)

    tw = jnp.asarray(theta_w, dtype=jnp.float32)                         # (Cint, Cin)
    pw = jnp.asarray(phi_w, dtype=jnp.float32)                           # (Cint, Cg)
    psw = jnp.asarray(psi_w, dtype=jnp.float32).reshape(Cint)            # (Cint,)
    psb = jnp.asarray(psi_b, dtype=jnp.float32).reshape(1)               # (1,)

    kernel = _make_kernel(Cin, Cg, Cint, W, Hg, Wg, TH)

    grid_spec = pltpu.PrefetchScalarGridSpec(
        num_scalar_prefetch=4,
        grid=(B, nT),
        in_specs=[
            pl.BlockSpec((1, Cin, THW), lambda b, t, *_: (b, 0, t)),     # x tile
            pl.BlockSpec((1, Cg, HgWg), lambda b, t, *_: (b, 0, 0)),     # whole gate
            pl.BlockSpec((Cint, Cin), lambda b, t, *_: (0, 0)),          # theta w
            pl.BlockSpec((Cint, Cg), lambda b, t, *_: (0, 0)),           # phi w
            pl.BlockSpec((Wg, W), lambda b, t, *_: (0, 0)),              # Rw^T
        ],
        out_specs=[
            pl.BlockSpec((1, Cin, THW), lambda b, t, *_: (b, 0, t)),     # y
            pl.BlockSpec((1, 1, THW), lambda b, t, *_: (b, 0, t)),       # sigm
        ],
        scratch_shapes=[
            pltpu.VMEM((Hg, Cint, W), jnp.float32),     # width-upsampled gate rows
            pltpu.VMEM((Cint, THW), jnp.float32),       # assembled phi upsample
        ],
    )

    y_flat, s_flat = pl.pallas_call(
        kernel,
        out_shape=(jax.ShapeDtypeStruct((B, Cin, HW), jnp.float32),
                   jax.ShapeDtypeStruct((B, 1, HW), jnp.float32)),
        grid_spec=grid_spec,
        compiler_params=pltpu.CompilerParams(
            dimension_semantics=("parallel", "parallel"),
            vmem_limit_bytes=32 * 1024 * 1024),
    )(row_i0, row_w1, psw, psb, x_flat, g_flat, tw, pw, rwT)

    W_y = y_flat.reshape(B, Cin, H, W)                                   # free views back
    sigm = s_flat.reshape(B, 1, H, W)
    return W_y, sigm


# ---------------------------------------------------------------------------
# Pure-JAX reference (same math) for a correctness self-check.
# ---------------------------------------------------------------------------
def _reference_forward(x, g, tw, pw, psw, psb, align_corners=False):
    B, Cin, H, W = x.shape
    _, Cg, Hg, Wg = g.shape
    Rh = jnp.asarray(_dense_interp_matrix(H, Hg, align_corners))
    Rw = jnp.asarray(_dense_interp_matrix(W, Wg, align_corners))
    theta_x = jnp.einsum('oc,bchw->bohw', tw, x)
    phi_g = jnp.einsum('oc,bchw->bohw', pw, g)
    phi_up = jnp.einsum('hk,bokl,wl->bohw', Rh, phi_g, Rw)
    f = jnp.maximum(theta_x + phi_up, 0.0)
    psi = jnp.einsum('o,bohw->bhw', psw, f) + psb
    sig = jax.nn.sigmoid(psi)[:, None, :, :]
    return sig * x, sig


def make_params(in_channels, gating_channels, inter_channels, key):
    k_theta, k_phi, k_psi = jax.random.split(key, 3)
    theta_w = jax.random.normal(k_theta, (inter_channels, in_channels),
                                dtype=jnp.float32) * np.sqrt(2.0 / in_channels)
    phi_w = jax.random.normal(k_phi, (inter_channels, gating_channels),
                              dtype=jnp.float32) * np.sqrt(2.0 / gating_channels)
    psi_w = jax.random.normal(k_psi, (inter_channels,),
                              dtype=jnp.float32) * np.sqrt(2.0 / inter_channels)
    psi_b = jnp.float32(10.0)   # nn.init.constant(self.psi.bias.data, 10.0)
    return theta_w, phi_w, psi_w, psi_b


if __name__ == "__main__":
    key = jax.random.PRNGKey(0)
    k_x, k_g, k_p = jax.random.split(key, 3)

    B = 2
    in_channels = 4
    gating_channels = 8
    inter_channels = in_channels // 2      # module default -> 2
    H = W = 16
    Hg = Wg = 8                            # lower-resolution gating signal

    x = jax.random.normal(k_x, (B, in_channels, H, W), dtype=jnp.float32)
    g = jax.random.normal(k_g, (B, gating_channels, Hg, Wg), dtype=jnp.float32)

    theta_w, phi_w, psi_w, psi_b = make_params(
        in_channels, gating_channels, inter_channels, k_p)

    # tile_rows=8 -> grid=(B, 2), lane-dense 128-wide spatial tiles.
    W_y, sigm = grid_attention_block_2d(x, g, theta_w, phi_w, psi_w, psi_b,
                                        tile_rows=8)
    jax.block_until_ready((W_y, sigm))

    assert W_y.shape == (B, in_channels, H, W)
    assert sigm.shape == (B, 1, H, W)

    y_ref, s_ref = _reference_forward(x, g, theta_w, phi_w, psi_w, psi_b)
    np.testing.assert_allclose(np.asarray(W_y), np.asarray(y_ref), rtol=1e-5, atol=1e-5)
    np.testing.assert_allclose(np.asarray(sigm), np.asarray(s_ref), rtol=1e-5, atol=1e-5)

    print("KERNEL_OK")
</pallas_src>

<mosaic_0001>
module attributes {stable_mosaic.version = 11 : i64} {
  func.func @kernel(%arg0: i32, %arg1: i32, %arg2: memref<16xi32, #tpu.memory_space<smem>>, %arg3: memref<16xf32, #tpu.memory_space<smem>>, %arg4: memref<2xf32, #tpu.memory_space<smem>>, %arg5: memref<1xf32, #tpu.memory_space<smem>>, %arg6: memref<1x4x128xf32, #tpu.memory_space<vmem>>, %arg7: memref<1x8x64xf32, #tpu.memory_space<vmem>>, %arg8: memref<2x4xf32, #tpu.memory_space<vmem>>, %arg9: memref<2x8xf32, #tpu.memory_space<vmem>>, %arg10: memref<8x16xf32, #tpu.memory_space<vmem>>, %arg11: memref<1x4x128xf32, #tpu.memory_space<vmem>>, %arg12: memref<1x1x128xf32, #tpu.memory_space<vmem>>, %arg13: memref<8x2x16xf32, #tpu.memory_space<vmem>>, %arg14: memref<2x128xf32, #tpu.memory_space<vmem>>) attributes {dimension_semantics = [#tpu.dimension_semantics<parallel>, #tpu.dimension_semantics<parallel>], iteration_bounds = array<i64: 2, 2>, scalar_prefetch = 4 : i64, scratch_operands = 2 : i64, tpu.core_type = #tpu.core_type<tc>, window_params = [{transform_indices = @transform_0, window_bounds = array<i64: 1, 4, 128>}, {transform_indices = @transform_1, window_bounds = array<i64: 1, 8, 64>}, {pipeline_mode = #tpu.pipeline_mode<synchronous>, transform_indices = @transform_2, window_bounds = array<i64: 2, 4>}, {pipeline_mode = #tpu.pipeline_mode<synchronous>, transform_indices = @transform_3, window_bounds = array<i64: 2, 8>}, {pipeline_mode = #tpu.pipeline_mode<synchronous>, transform_indices = @transform_4, window_bounds = array<i64: 8, 16>}, {transform_indices = @transform_5, window_bounds = array<i64: 1, 4, 128>}, {transform_indices = @transform_6, window_bounds = array<i64: 1, 1, 128>}]} {
    %c0 = arith.constant 0 : index
    %c0_0 = arith.constant 0 : index
    %c0_1 = arith.constant 0 : index
    %0 = vector.load %arg6[%c0, %c0_0, %c0_1] : memref<1x4x128xf32, #tpu.memory_space<vmem>>, vector<1x4x128xf32>
    %1 = vector.shape_cast %0 : vector<1x4x128xf32> to vector<4x128xf32>
    %c0_2 = arith.constant 0 : index
    %c0_3 = arith.constant 0 : index
    %2 = vector.load %arg8[%c0_2, %c0_3] : memref<2x4xf32, #tpu.memory_space<vmem>>, vector<2x4xf32>
    %cst = arith.constant dense<0.000000e+00> : vector<2x128xf32>
    %3 = tpu.matmul %2, %1, %cst {dimension_numbers = #tpu.dot_dimension_numbers<[1], [0], [0], [1], [0, 0, 1, 1], [], []>} : vector<2x4xf32>, vector<4x128xf32>, vector<2x128xf32> -> vector<2x128xf32>
    %c0_4 = arith.constant 0 : index
    %c0_5 = arith.constant 0 : index
    %4 = vector.load %arg9[%c0_4, %c0_5] : memref<2x8xf32, #tpu.memory_space<vmem>>, vector<2x8xf32>
    %c0_6 = arith.constant 0 : index
    %c0_7 = arith.constant 0 : index
    %c0_8 = arith.constant 0 : index
    %5 = vector.load %arg7[%c0_6, %c0_7, %c0_8] : memref<1x8x64xf32, #tpu.memory_space<vmem>>, vector<1x8x64xf32>
    %6 = vector.shape_cast %5 : vector<1x8x64xf32> to vector<8x64xf32>
    %cst_9 = arith.constant dense<0.000000e+00> : vector<2x64xf32>
    %7 = tpu.matmul %4, %6, %cst_9 {dimension_numbers = #tpu.dot_dimension_numbers<[1], [0], [0], [1], [0, 0, 1, 1], [], []>} : vector<2x8xf32>, vector<8x64xf32>, vector<2x64xf32> -> vector<2x64xf32>
    %8 = vector.extract_strided_slice %7 {offsets = [0, 0], sizes = [2, 8], strides = [1, 1]} : vector<2x64xf32> to vector<2x8xf32>
    %c0_10 = arith.constant 0 : index
    %c0_11 = arith.constant 0 : index
    %9 = vector.load %arg10[%c0_10, %c0_11] : memref<8x16xf32, #tpu.memory_space<vmem>>, vector<8x16xf32>
    %cst_12 = arith.constant dense<0.000000e+00> : vector<2x16xf32>
    %10 = tpu.matmul %8, %9, %cst_12 {dimension_numbers = #tpu.dot_dimension_numbers<[1], [0], [0], [1], [0, 0, 1, 1], [], []>} : vector<2x8xf32>, vector<8x16xf32>, vector<2x16xf32> -> vector<2x16xf32>
    %c0_13 = arith.constant 0 : index
    %c0_14 = arith.constant 0 : index
    %c0_15 = arith.constant 0 : index
    %11 = vector.load %arg13[%c0_13, %c0_14, %c0_15] : memref<8x2x16xf32, #tpu.memory_space<vmem>>, vector<1x2x16xf32>
    %12 = vector.shape_cast %11 : vector<1x2x16xf32> to vector<2x16xf32>
    %13 = vector.shape_cast %10 : vector<2x16xf32> to vector<1x2x16xf32>
    tpu.vector_store %arg13[%c0_13, %c0_14, %c0_15], %13 {strides = array<i32>} : memref<8x2x16xf32, #tpu.memory_space<vmem>>, vector<1x2x16xf32>,
    %14 = vector.extract_strided_slice %7 {offsets = [0, 8], sizes = [2, 8], strides = [1, 1]} : vector<2x64xf32> to vector<2x8xf32>
    %c0_16 = arith.constant 0 : index
    %c0_17 = arith.constant 0 : index
    %15 = vector.load %arg10[%c0_16, %c0_17] : memref<8x16xf32, #tpu.memory_space<vmem>>, vector<8x16xf32>
    %cst_18 = arith.constant dense<0.000000e+00> : vector<2x16xf32>
    %16 = tpu.matmul %14, %15, %cst_18 {dimension_numbers = #tpu.dot_dimension_numbers<[1], [0], [0], [1], [0, 0, 1, 1], [], []>} : vector<2x8xf32>, vector<8x16xf32>, vector<2x16xf32> -> vector<2x16xf32>
    %c1 = arith.constant 1 : index
    %c0_19 = arith.constant 0 : index
    %c0_20 = arith.constant 0 : index
    %17 = vector.load %arg13[%c1, %c0_19, %c0_20] : memref<8x2x16xf32, #tpu.memory_space<vmem>>, vector<1x2x16xf32>
    %18 = vector.shape_cast %17 : vector<1x2x16xf32> to vector<2x16xf32>
    %19 = vector.shape_cast %16 : vector<2x16xf32> to vector<1x2x16xf32>
    tpu.vector_store %arg13[%c1, %c0_19, %c0_20], %19 {strides = array<i32>} : memref<8x2x16xf32, #tpu.memory_space<vmem>>, vector<1x2x16xf32>,
    %20 = vector.extract_strided_slice %7 {offsets = [0, 16], sizes = [2, 8], strides = [1, 1]} : vector<2x64xf32> to vector<2x8xf32>
    %c0_21 = arith.constant 0 : index
    %c0_22 = arith.constant 0 : index
    %21 = vector.load %arg10[%c0_21, %c0_22] : memref<8x16xf32, #tpu.memory_space<vmem>>, vector<8x16xf32>
    %cst_23 = arith.constant dense<0.000000e+00> : vector<2x16xf32>
    %22 = tpu.matmul %20, %21, %cst_23 {dimension_numbers = #tpu.dot_dimension_numbers<[1], [0], [0], [1], [0, 0, 1, 1], [], []>} : vector<2x8xf32>, vector<8x16xf32>, vector<2x16xf32> -> vector<2x16xf32>
    %c2 = arith.constant 2 : index
    %c0_24 = arith.constant 0 : index
    %c0_25 = arith.constant 0 : index
    %23 = vector.load %arg13[%c2, %c0_24, %c0_25] : memref<8x2x16xf32, #tpu.memory_space<vmem>>, vector<1x2x16xf32>
    %24 = vector.shape_cast %23 : vector<1x2x16xf32> to vector<2x16xf32>
    %25 = vector.shape_cast %22 : vector<2x16xf32> to vector<1x2x16xf32>
    tpu.vector_store %arg13[%c2, %c0_24, %c0_25], %25 {strides = array<i32>} : memref<8x2x16xf32, #tpu.memory_space<vmem>>, vector<1x2x16xf32>,
    %26 = vector.extract_strided_slice %7 {offsets = [0, 24], sizes = [2, 8], strides = [1, 1]} : vector<2x64xf32> to vector<2x8xf32>
    %c0_26 = arith.constant 0 : index
    %c0_27 = arith.constant 0 : index
    %27 = vector.load %arg10[%c0_26, %c0_27] : memref<8x16xf32, #tpu.memory_space<vmem>>, vector<8x16xf32>
    %cst_28 = arith.constant dense<0.000000e+00> : vector<2x16xf32>
    %28 = tpu.matmul %26, %27, %cst_28 {dimension_numbers = #tpu.dot_dimension_numbers<[1], [0], [0], [1], [0, 0, 1, 1], [], []>} : vector<2x8xf32>, vector<8x16xf32>, vector<2x16xf32> -> vector<2x16xf32>
    %c3 = arith.constant 3 : index
    %c0_29 = arith.constant 0 : index
    %c0_30 = arith.constant 0 : index
    %29 = vector.load %arg13[%c3, %c0_29, %c0_30] : memref<8x2x16xf32, #tpu.memory_space<vmem>>, vector<1x2x16xf32>
    %30 = vector.shape_cast %29 : vector<1x2x16xf32> to vector<2x16xf32>
    %31 = vector.shape_cast %28 : vector<2x16xf32> to vector<1x2x16xf32>
    tpu.vector_store %arg13[%c3, %c0_29, %c0_30], %31 {strides = array<i32>} : memref<8x2x16xf32, #tpu.memory_space<vmem>>, vector<1x2x16xf32>,
    %32 = vector.extract_strided_slice %7 {offsets = [0, 32], sizes = [2, 8], strides = [1, 1]} : vector<2x64xf32> to vector<2x8xf32>
    %c0_31 = arith.constant 0 : index
    %c0_32 = arith.constant 0 : index
    %33 = vector.load %arg10[%c0_31, %c0_32] : memref<8x16xf32, #tpu.memory_space<vmem>>, vector<8x16xf32>
    %cst_33 = arith.constant dense<0.000000e+00> : vector<2x16xf32>
    %34 = tpu.matmul %32, %33, %cst_33 {dimension_numbers = #tpu.dot_dimension_numbers<[1], [0], [0], [1], [0, 0, 1, 1], [], []>} : vector<2x8xf32>, vector<8x16xf32>, vector<2x16xf32> -> vector<2x16xf32>
    %c4 = arith.constant 4 : index
    %c0_34 = arith.constant 0 : index
    %c0_35 = arith.constant 0 : index
    %35 = vector.load %arg13[%c4, %c0_34, %c0_35] : memref<8x2x16xf32, #tpu.memory_space<vmem>>, vector<1x2x16xf32>
    %36 = vector.shape_cast %35 : vector<1x2x16xf32> to vector<2x16xf32>
    %37 = vector.shape_cast %34 : vector<2x16xf32> to vector<1x2x16xf32>
    tpu.vector_store %arg13[%c4, %c0_34, %c0_35], %37 {strides = array<i32>} : memref<8x2x16xf32, #tpu.memory_space<vmem>>, vector<1x2x16xf32>,
    %38 = vector.extract_strided_slice %7 {offsets = [0, 40], sizes = [2, 8], strides = [1, 1]} : vector<2x64xf32> to vector<2x8xf32>
    %c0_36 = arith.constant 0 : index
    %c0_37 = arith.constant 0 : index
    %39 = vector.load %arg10[%c0_36, %c0_37] : memref<8x16xf32, #tpu.memory_space<vmem>>, vector<8x16xf32>
    %cst_38 = arith.constant dense<0.000000e+00> : vector<2x16xf32>
    %40 = tpu.matmul %38, %39, %cst_38 {dimension_numbers = #tpu.dot_dimension_numbers<[1], [0], [0], [1], [0, 0, 1, 1], [], []>} : vector<2x8xf32>, vector<8x16xf32>, vector<2x16xf32> -> vector<2x16xf32>
    %c5 = arith.constant 5 : index
    %c0_39 = arith.constant 0 : index
    %c0_40 = arith.constant 0 : index
    %41 = vector.load %arg13[%c5, %c0_39, %c0_40] : memref<8x2x16xf32, #tpu.memory_space<vmem>>, vector<1x2x16xf32>
    %42 = vector.shape_cast %41 : vector<1x2x16xf32> to vector<2x16xf32>
    %43 = vector.shape_cast %40 : vector<2x16xf32> to vector<1x2x16xf32>
    tpu.vector_store %arg13[%c5, %c0_39, %c0_40], %43 {strides = array<i32>} : memref<8x2x16xf32, #tpu.memory_space<vmem>>, vector<1x2x16xf32>,
    %44 = vector.extract_strided_slice %7 {offsets = [0, 48], sizes = [2, 8], strides = [1, 1]} : vector<2x64xf32> to vector<2x8xf32>
    %c0_41 = arith.constant 0 : index
    %c0_42 = arith.constant 0 : index
    %45 = vector.load %arg10[%c0_41, %c0_42] : memref<8x16xf32, #tpu.memory_space<vmem>>, vector<8x16xf32>
    %cst_43 = arith.constant dense<0.000000e+00> : vector<2x16xf32>
    %46 = tpu.matmul %44, %45, %cst_43 {dimension_numbers = #tpu.dot_dimension_numbers<[1], [0], [0], [1], [0, 0, 1, 1], [], []>} : vector<2x8xf32>, vector<8x16xf32>, vector<2x16xf32> -> vector<2x16xf32>
    %c6 = arith.constant 6 : index
    %c0_44 = arith.constant 0 : index
    %c0_45 = arith.constant 0 : index
    %47 = vector.load %arg13[%c6, %c0_44, %c0_45] : memref<8x2x16xf32, #tpu.memory_space<vmem>>, vector<1x2x16xf32>
    %48 = vector.shape_cast %47 : vector<1x2x16xf32> to vector<2x16xf32>
    %49 = vector.shape_cast %46 : vector<2x16xf32> to vector<1x2x16xf32>
    tpu.vector_store %arg13[%c6, %c0_44, %c0_45], %49 {strides = array<i32>} : memref<8x2x16xf32, #tpu.memory_space<vmem>>, vector<1x2x16xf32>,
    %50 = vector.extract_strided_slice %7 {offsets = [0, 56], sizes = [2, 8], strides = [1, 1]} : vector<2x64xf32> to vector<2x8xf32>
    %c0_46 = arith.constant 0 : index
    %c0_47 = arith.constant 0 : index
    %51 = vector.load %arg10[%c0_46, %c0_47] : memref<8x16xf32, #tpu.memory_space<vmem>>, vector<8x16xf32>
    %cst_48 = arith.constant dense<0.000000e+00> : vector<2x16xf32>
    %52 = tpu.matmul %50, %51, %cst_48 {dimension_numbers = #tpu.dot_dimension_numbers<[1], [0], [0], [1], [0, 0, 1, 1], [], []>} : vector<2x8xf32>, vector<8x16xf32>, vector<2x16xf32> -> vector<2x16xf32>
    %c7 = arith.constant 7 : index
    %c0_49 = arith.constant 0 : index
    %c0_50 = arith.constant 0 : index
    %53 = vector.load %arg13[%c7, %c0_49, %c0_50] : memref<8x2x16xf32, #tpu.memory_space<vmem>>, vector<1x2x16xf32>
    %54 = vector.shape_cast %53 : vector<1x2x16xf32> to vector<2x16xf32>
    %55 = vector.shape_cast %52 : vector<2x16xf32> to vector<1x2x16xf32>
    tpu.vector_store %arg13[%c7, %c0_49, %c0_50], %55 {strides = array<i32>} : memref<8x2x16xf32, #tpu.memory_space<vmem>>, vector<1x2x16xf32>,
    %c8_i32 = arith.constant 8 : i32
    %56 = arith.muli %arg1, %c8_i32 : i32
    %c0_i32 = arith.constant 0 : i32
    %57 = arith.addi %56, %c0_i32 : i32
    %58 = arith.index_cast %57 : i32 to index
    %59 = memref.load %arg2[%58] : memref<16xi32, #tpu.memory_space<smem>>
    %c1_i32 = arith.constant 1 : i32
    %60 = arith.addi %59, %c1_i32 : i32
    %c7_i32 = arith.constant 7 : i32
    %61 = arith.minsi %60, %c7_i32 : i32
    %62 = arith.index_cast %57 : i32 to index
    %63 = memref.load %arg3[%62] : memref<16xf32, #tpu.memory_space<smem>>
    %cst_51 = arith.constant 1.000000e+00 : f32
    %64 = arith.subf %cst_51, %63 : f32
    %65 = arith.index_cast %59 : i32 to index
    %c0_52 = arith.constant 0 : index
    %c0_53 = arith.constant 0 : index
    %66 = vector.load %arg13[%65, %c0_52, %c0_53] : memref<8x2x16xf32, #tpu.memory_space<vmem>>, vector<1x2x16xf32>
    %67 = vector.shape_cast %66 : vector<1x2x16xf32> to vector<2x16xf32>
    %68 = vector.broadcast %64 : f32 to vector<2x16xf32>
    %69 = arith.mulf %68, %67 : vector<2x16xf32>
    %70 = arith.index_cast %61 : i32 to index
    %c0_54 = arith.constant 0 : index
    %c0_55 = arith.constant 0 : index
    %71 = vector.load %arg13[%70, %c0_54, %c0_55] : memref<8x2x16xf32, #tpu.memory_space<vmem>>, vector<1x2x16xf32>
    %72 = vector.shape_cast %71 : vector<1x2x16xf32> to vector<2x16xf32>
    %73 = vector.broadcast %63 : f32 to vector<2x16xf32>
    %74 = arith.mulf %73, %72 : vector<2x16xf32>
    %75 = arith.addf %69, %74 : vector<2x16xf32>
    %c0_56 = arith.constant 0 : index
    %c0_57 = arith.constant 0 : index
    %76 = vector.load %arg14[%c0_56, %c0_57] : memref<2x128xf32, #tpu.memory_space<vmem>>, vector<2x16xf32>
    tpu.vector_store %arg14[%c0_56, %c0_57], %75 {strides = array<i32>} : memref<2x128xf32, #tpu.memory_space<vmem>>, vector<2x16xf32>,
    %c8_i32_58 = arith.constant 8 : i32
    %77 = arith.muli %arg1, %c8_i32_58 : i32
    %c1_i32_59 = arith.constant 1 : i32
    %78 = arith.addi %77, %c1_i32_59 : i32
    %79 = arith.index_cast %78 : i32 to index
    %80 = memref.load %arg2[%79] : memref<16xi32, #tpu.memory_space<smem>>
    %c1_i32_60 = arith.constant 1 : i32
    %81 = arith.addi %80, %c1_i32_60 : i32
    %c7_i32_61 = arith.constant 7 : i32
    %82 = arith.minsi %81, %c7_i32_61 : i32
    %83 = arith.index_cast %78 : i32 to index
    %84 = memref.load %arg3[%83] : memref<16xf32, #tpu.memory_space<smem>>
    %cst_62 = arith.constant 1.000000e+00 : f32
    %85 = arith.subf %cst_62, %84 : f32
    %86 = arith.index_cast %80 : i32 to index
    %c0_63 = arith.constant 0 : index
    %c0_64 = arith.constant 0 : index
    %87 = vector.load %arg13[%86, %c0_63, %c0_64] : memref<8x2x16xf32, #tpu.memory_space<vmem>>, vector<1x2x16xf32>
    %88 = vector.shape_cast %87 : vector<1x2x16xf32> to vector<2x16xf32>
    %89 = vector.broadcast %85 : f32 to vector<2x16xf32>
    %90 = arith.mulf %89, %88 : vector<2x16xf32>
    %91 = arith.index_cast %82 : i32 to index
    %c0_65 = arith.constant 0 : index
    %c0_66 = arith.constant 0 : index
    %92 = vector.load %arg13[%91, %c0_65, %c0_66] : memref<8x2x16xf32, #tpu.memory_space<vmem>>, vector<1x2x16xf32>
    %93 = vector.shape_cast %92 : vector<1x2x16xf32> to vector<2x16xf32>
    %94 = vector.broadcast %84 : f32 to vector<2x16xf32>
    %95 = arith.mulf %94, %93 : vector<2x16xf32>
    %96 = arith.addf %90, %95 : vector<2x16xf32>
    %c0_67 = arith.constant 0 : index
    %c16 = arith.constant 16 : index
    %97 = vector.load %arg14[%c0_67, %c16] : memref<2x128xf32, #tpu.memory_space<vmem>>, vector<2x16xf32>
    tpu.vector_store %arg14[%c0_67, %c16], %96 {strides = array<i32>} : memref<2x128xf32, #tpu.memory_space<vmem>>, vector<2x16xf32>,
    %c8_i32_68 = arith.constant 8 : i32
    %98 = arith.muli %arg1, %c8_i32_68 : i32
    %c2_i32 = arith.constant 2 : i32
    %99 = arith.addi %98, %c2_i32 : i32
    %100 = arith.index_cast %99 : i32 to index
    %101 = memref.load %arg2[%100] : memref<16xi32, #tpu.memory_space<smem>>
    %c1_i32_69 = arith.constant 1 : i32
    %102 = arith.addi %101, %c1_i32_69 : i32
    %c7_i32_70 = arith.constant 7 : i32
    %103 = arith.minsi %102, %c7_i32_70 : i32
    %104 = arith.index_cast %99 : i32 to index
    %105 = memref.load %arg3[%104] : memref<16xf32, #tpu.memory_space<smem>>
    %cst_71 = arith.constant 1.000000e+00 : f32
    %106 = arith.subf %cst_71, %105 : f32
    %107 = arith.index_cast %101 : i32 to index
    %c0_72 = arith.constant 0 : index
    %c0_73 = arith.constant 0 : index
    %108 = vector.load %arg13[%107, %c0_72, %c0_73] : memref<8x2x16xf32, #tpu.memory_space<vmem>>, vector<1x2x16xf32>
    %109 = vector.shape_cast %108 : vector<1x2x16xf32> to vector<2x16xf32>
    %110 = vector.broadcast %106 : f32 to vector<2x16xf32>
    %111 = arith.mulf %110, %109 : vector<2x16xf32>
    %112 = arith.index_cast %103 : i32 to index
    %c0_74 = arith.constant 0 : index
    %c0_75 = arith.constant 0 : index
    %113 = vector.load %arg13[%112, %c0_74, %c0_75] : memref<8x2x16xf32, #tpu.memory_space<vmem>>, vector<1x2x16xf32>
    %114 = vector.shape_cast %113 : vector<1x2x16xf32> to vector<2x16xf32>
    %115 = vector.broadcast %105 : f32 to vector<2x16xf32>
    %116 = arith.mulf %115, %114 : vector<2x16xf32>
    %117 = arith.addf %111, %116 : vector<2x16xf32>
    %c0_76 = arith.constant 0 : index
    %c32 = arith.constant 32 : index
    %118 = vector.load %arg14[%c0_76, %c32] : memref<2x128xf32, #tpu.memory_space<vmem>>, vector<2x16xf32>
    tpu.vector_store %arg14[%c0_76, %c32], %117 {strides = array<i32>} : memref<2x128xf32, #tpu.memory_space<vmem>>, vector<2x16xf32>,
    %c8_i32_77 = arith.constant 8 : i32
    %119 = arith.muli %arg1, %c8_i32_77 : i32
    %c3_i32 = arith.constant 3 : i32
    %120 = arith.addi %119, %c3_i32 : i32
    %121 = arith.index_cast %120 : i32 to index
    %122 = memref.load %arg2[%121] : memref<16xi32, #tpu.memory_space<smem>>
    %c1_i32_78 = arith.constant 1 : i32
    %123 = arith.addi %122, %c1_i32_78 : i32
    %c7_i32_79 = arith.constant 7 : i32
    %124 = arith.minsi %123, %c7_i32_79 : i32
    %125 = arith.index_cast %120 : i32 to index
    %126 = memref.load %arg3[%125] : memref<16xf32, #tpu.memory_space<smem>>
    %cst_80 = arith.constant 1.000000e+00 : f32
    %127 = arith.subf %cst_80, %126 : f32
    %128 = arith.index_cast %122 : i32 to index
    %c0_81 = arith.constant 0 : index
    %c0_82 = arith.constant 0 : index
    %129 = vector.load %arg13[%128, %c0_81, %c0_82] : memref<8x2x16xf32, #tpu.memory_space<vmem>>, vector<1x2x16xf32>
    %130 = vector.shape_cast %129 : vector<1x2x16xf32> to vector<2x16xf32>
    %131 = vector.broadcast %127 : f32 to vector<2x16xf32>
    %132 = arith.mulf %131, %130 : vector<2x16xf32>
    %133 = arith.index_cast %124 : i32 to index
    %c0_83 = arith.constant 0 : index
    %c0_84 = arith.constant 0 : index
    %134 = vector.load %arg13[%133, %c0_83, %c0_84] : memref<8x2x16xf32, #tpu.memory_space<vmem>>, vector<1x2x16xf32>
    %135 = vector.shape_cast %134 : vector<1x2x16xf32> to vector<2x16xf32>
    %136 = vector.broadcast %126 : f32 to vector<2x16xf32>
    %137 = arith.mulf %136, %135 : vector<2x16xf32>
    %138 = arith.addf %132, %137 : vector<2x16xf32>
    %c0_85 = arith.constant 0 : index
    %c48 = arith.constant 48 : index
    %139 = vector.load %arg14[%c0_85, %c48] : memref<2x128xf32, #tpu.memory_space<vmem>>, vector<2x16xf32>
    tpu.vector_store %arg14[%c0_85, %c48], %138 {strides = array<i32>} : memref<2x128xf32, #tpu.memory_space<vmem>>, vector<2x16xf32>,
    %c8_i32_86 = arith.constant 8 : i32
    %140 = arith.muli %arg1, %c8_i32_86 : i32
    %c4_i32 = arith.constant 4 : i32
    %141 = arith.addi %140, %c4_i32 : i32
    %142 = arith.index_cast %141 : i32 to index
    %143 = memref.load %arg2[%142] : memref<16xi32, #tpu.memory_space<smem>>
    %c1_i32_87 = arith.constant 1 : i32
    %144 = arith.addi %143, %c1_i32_87 : i32
    %c7_i32_88 = arith.constant 7 : i32
    %145 = arith.minsi %144, %c7_i32_88 : i32
    %146 = arith.index_cast %141 : i32 to index
    %147 = memref.load %arg3[%146] : memref<16xf32, #tpu.memory_space<smem>>
    %cst_89 = arith.constant 1.000000e+00 : f32
    %148 = arith.subf %cst_89, %147 : f32
    %149 = arith.index_cast %143 : i32 to index
    %c0_90 = arith.constant 0 : index
    %c0_91 = arith.constant 0 : index
    %150 = vector.load %arg13[%149, %c0_90, %c0_91] : memref<8x2x16xf32, #tpu.memory_space<vmem>>, vector<1x2x16xf32>
    %151 = vector.shape_cast %150 : vector<1x2x16xf32> to vector<2x16xf32>
    %152 = vector.broadcast %148 : f32 to vector<2x16xf32>
    %153 = arith.mulf %152, %151 : vector<2x16xf32>
    %154 = arith.index_cast %145 : i32 to index
    %c0_92 = arith.constant 0 : index
    %c0_93 = arith.constant 0 : index
    %155 = vector.load %arg13[%154, %c0_92, %c0_93] : memref<8x2x16xf32, #tpu.memory_space<vmem>>, vector<1x2x16xf32>
    %156 = vector.shape_cast %155 : vector<1x2x16xf32> to vector<2x16xf32>
    %157 = vector.broadcast %147 : f32 to vector<2x16xf32>
    %158 = arith.mulf %157, %156 : vector<2x16xf32>
    %159 = arith.addf %153, %158 : vector<2x16xf32>
    %c0_94 = arith.constant 0 : index
    %c64 = arith.constant 64 : index
    %160 = vector.load %arg14[%c0_94, %c64] : memref<2x128xf32, #tpu.memory_space<vmem>>, vector<2x16xf32>
    tpu.vector_store %arg14[%c0_94, %c64], %159 {strides = array<i32>} : memref<2x128xf32, #tpu.memory_space<vmem>>, vector<2x16xf32>,
    %c8_i32_95 = arith.constant 8 : i32
    %161 = arith.muli %arg1, %c8_i32_95 : i32
    %c5_i32 = arith.constant 5 : i32
    %162 = arith.addi %161, %c5_i32 : i32
    %163 = arith.index_cast %162 : i32 to index
    %164 = memref.load %arg2[%163] : memref<16xi32, #tpu.memory_space<smem>>
    %c1_i32_96 = arith.constant 1 : i32
    %165 = arith.addi %164, %c1_i32_96 : i32
    %c7_i32_97 = arith.constant 7 : i32
    %166 = arith.minsi %165, %c7_i32_97 : i32
    %167 = arith.index_cast %162 : i32 to index
    %168 = memref.load %arg3[%167] : memref<16xf32, #tpu.memory_space<smem>>
    %cst_98 = arith.constant 1.000000e+00 : f32
    %169 = arith.subf %cst_98, %168 : f32
    %170 = arith.index_cast %164 : i32 to index
    %c0_99 = arith.constant 0 : index
    %c0_100 = arith.constant 0 : index
    %171 = vector.load %arg13[%170, %c0_99, %c0_100] : memref<8x2x16xf32, #tpu.memory_space<vmem>>, vector<1x2x16xf32>
    %172 = vector.shape_cast %171 : vector<1x2x16xf32> to vector<2x16xf32>
    %173 = vector.broadcast %169 : f32 to vector<2x16xf32>
    %174 = arith.mulf %173, %172 : vector<2x16xf32>
    %175 = arith.index_cast %166 : i32 to index
    %c0_101 = arith.constant 0 : index
    %c0_102 = arith.constant 0 : index
    %176 = vector.load %arg13[%175, %c0_101, %c0_102] : memref<8x2x16xf32, #tpu.memory_space<vmem>>, vector<1x2x16xf32>
    %177 = vector.shape_cast %176 : vector<1x2x16xf32> to vector<2x16xf32>
    %178 = vector.broadcast %168 : f32 to vector<2x16xf32>
    %179 = arith.mulf %178, %177 : vector<2x16xf32>
    %180 = arith.addf %174, %179 : vector<2x16xf32>
    %c0_103 = arith.constant 0 : index
    %c80 = arith.constant 80 : index
    %181 = vector.load %arg14[%c0_103, %c80] : memref<2x128xf32, #tpu.memory_space<vmem>>, vector<2x16xf32>
    tpu.vector_store %arg14[%c0_103, %c80], %180 {strides = array<i32>} : memref<2x128xf32, #tpu.memory_space<vmem>>, vector<2x16xf32>,
    %c8_i32_104 = arith.constant 8 : i32
    %182 = arith.muli %arg1, %c8_i32_104 : i32
    %c6_i32 = arith.constant 6 : i32
    %183 = arith.addi %182, %c6_i32 : i32
    %184 = arith.index_cast %183 : i32 to index
    %185 = memref.load %arg2[%184] : memref<16xi32, #tpu.memory_space<smem>>
    %c1_i32_105 = arith.constant 1 : i32
    %186 = arith.addi %185, %c1_i32_105 : i32
    %c7_i32_106 = arith.constant 7 : i32
    %187 = arith.minsi %186, %c7_i32_106 : i32
    %188 = arith.index_cast %183 : i32 to index
    %189 = memref.load %arg3[%188] : memref<16xf32, #tpu.memory_space<smem>>
    %cst_107 = arith.constant 1.000000e+00 : f32
    %190 = arith.subf %cst_107, %189 : f32
    %191 = arith.index_cast %185 : i32 to index
    %c0_108 = arith.constant 0 : index
    %c0_109 = arith.constant 0 : index
    %192 = vector.load %arg13[%191, %c0_108, %c0_109] : memref<8x2x16xf32, #tpu.memory_space<vmem>>, vector<1x2x16xf32>
    %193 = vector.shape_cast %192 : vector<1x2x16xf32> to vector<2x16xf32>
    %194 = vector.broadcast %190 : f32 to vector<2x16xf32>
    %195 = arith.mulf %194, %193 : vector<2x16xf32>
    %196 = arith.index_cast %187 : i32 to index
    %c0_110 = arith.constant 0 : index
    %c0_111 = arith.constant 0 : index
    %197 = vector.load %arg13[%196, %c0_110, %c0_111] : memref<8x2x16xf32, #tpu.memory_space<vmem>>, vector<1x2x16xf32>
    %198 = vector.shape_cast %197 : vector<1x2x16xf32> to vector<2x16xf32>
    %199 = vector.broadcast %189 : f32 to vector<2x16xf32>
    %200 = arith.mulf %199, %198 : vector<2x16xf32>
    %201 = arith.addf %195, %200 : vector<2x16xf32>
    %c0_112 = arith.constant 0 : index
    %c96 = arith.constant 96 : index
    %202 = vector.load %arg14[%c0_112, %c96] : memref<2x128xf32, #tpu.memory_space<vmem>>, vector<2x16xf32>
    tpu.vector_store %arg14[%c0_112, %c96], %201 {strides = array<i32>} : memref<2x128xf32, #tpu.memory_space<vmem>>, vector<2x16xf32>,
    %c8_i32_113 = arith.constant 8 : i32
    %203 = arith.muli %arg1, %c8_i32_113 : i32
    %c7_i32_114 = arith.constant 7 : i32
    %204 = arith.addi %203, %c7_i32_114 : i32
    %205 = arith.index_cast %204 : i32 to index
    %206 = memref.load %arg2[%205] : memref<16xi32, #tpu.memory_space<smem>>
    %c1_i32_115 = arith.constant 1 : i32
    %207 = arith.addi %206, %c1_i32_115 : i32
    %c7_i32_116 = arith.constant 7 : i32
    %208 = arith.minsi %207, %c7_i32_116 : i32
    %209 = arith.index_cast %204 : i32 to index
    %210 = memref.load %arg3[%209] : memref<16xf32, #tpu.memory_space<smem>>
    %cst_117 = arith.constant 1.000000e+00 : f32
    %211 = arith.subf %cst_117, %210 : f32
    %212 = arith.index_cast %206 : i32 to index
    %c0_118 = arith.constant 0 : index
    %c0_119 = arith.constant 0 : index
    %213 = vector.load %arg13[%212, %c0_118, %c0_119] : memref<8x2x16xf32, #tpu.memory_space<vmem>>, vector<1x2x16xf32>
    %214 = vector.shape_cast %213 : vector<1x2x16xf32> to vector<2x16xf32>
    %215 = vector.broadcast %211 : f32 to vector<2x16xf32>
    %216 = arith.mulf %215, %214 : vector<2x16xf32>
    %217 = arith.index_cast %208 : i32 to index
    %c0_120 = arith.constant 0 : index
    %c0_121 = arith.constant 0 : index
    %218 = vector.load %arg13[%217, %c0_120, %c0_121] : memref<8x2x16xf32, #tpu.memory_space<vmem>>, vector<1x2x16xf32>
    %219 = vector.shape_cast %218 : vector<1x2x16xf32> to vector<2x16xf32>
    %220 = vector.broadcast %210 : f32 to vector<2x16xf32>
    %221 = arith.mulf %220, %219 : vector<2x16xf32>
    %222 = arith.addf %216, %221 : vector<2x16xf32>
    %c0_122 = arith.constant 0 : index
    %c112 = arith.constant 112 : index
    %223 = vector.load %arg14[%c0_122, %c112] : memref<2x128xf32, #tpu.memory_space<vmem>>, vector<2x16xf32>
    tpu.vector_store %arg14[%c0_122, %c112], %222 {strides = array<i32>} : memref<2x128xf32, #tpu.memory_space<vmem>>, vector<2x16xf32>,
    %c0_123 = arith.constant 0 : index
    %c0_124 = arith.constant 0 : index
    %224 = vector.load %arg14[%c0_123, %c0_124] : memref<2x128xf32, #tpu.memory_space<vmem>>, vector<2x128xf32>
    %225 = arith.addf %3, %224 : vector<2x128xf32>
    %cst_125 = arith.constant 0.000000e+00 : f32
    %226 = vector.broadcast %cst_125 : f32 to vector<2x128xf32>
    %227 = arith.maximumf %225, %226 : vector<2x128xf32>
    %c0_126 = arith.constant 0 : index
    %228 = memref.load %arg5[%c0_126] : memref<1xf32, #tpu.memory_space<smem>>
    %c0_127 = arith.constant 0 : index
    %229 = memref.load %arg4[%c0_127] : memref<2xf32, #tpu.memory_space<smem>>
    %230 = vector.extract_strided_slice %227 {offsets = [0, 0], sizes = [1, 128], strides = [1, 1]} : vector<2x128xf32> to vector<1x128xf32>
    %231 = vector.shape_cast %230 : vector<1x128xf32> to vector<128xf32>
    %232 = vector.broadcast %229 : f32 to vector<128xf32>
    %233 = arith.mulf %232, %231 : vector<128xf32>
    %234 = vector.broadcast %228 : f32 to vector<128xf32>
    %235 = arith.addf %234, %233 : vector<128xf32>
    %c1_128 = arith.constant 1 : index
    %236 = memref.load %arg4[%c1_128] : memref<2xf32, #tpu.memory_space<smem>>
    %237 = vector.extract_strided_slice %227 {offsets = [1, 0], sizes = [1, 128], strides = [1, 1]} : vector<2x128xf32> to vector<1x128xf32>
    %238 = vector.shape_cast %237 : vector<1x128xf32> to vector<128xf32>
    %239 = vector.broadcast %236 : f32 to vector<128xf32>
    %240 = arith.mulf %239, %238 : vector<128xf32>
    %241 = arith.addf %235, %240 : vector<128xf32>
    %242 = arith.negf %241 : vector<128xf32>
    %243 = math.exp %242 : vector<128xf32>
    %cst_129 = arith.constant 1.000000e+00 : f32
    %244 = vector.broadcast %cst_129 : f32 to vector<128xf32>
    %245 = arith.addf %244, %243 : vector<128xf32>
    %246 = arith.divf %244, %245 : vector<128xf32>
    %247 = vector.shape_cast %246 : vector<128xf32> to vector<1x128xf32>
    %c0_130 = arith.constant 0 : index
    %c0_131 = arith.constant 0 : index
    %c0_132 = arith.constant 0 : index
    %248 = vector.load %arg12[%c0_130, %c0_131, %c0_132] : memref<1x1x128xf32, #tpu.memory_space<vmem>>, vector<1x1x128xf32>
    %249 = vector.shape_cast %248 : vector<1x1x128xf32> to vector<1x128xf32>
    %250 = vector.shape_cast %247 : vector<1x128xf32> to vector<1x1x128xf32>
    tpu.vector_store %arg12[%c0_130, %c0_131, %c0_132], %250 {strides = array<i32>} : memref<1x1x128xf32, #tpu.memory_space<vmem>>, vector<1x1x128xf32>,
    %251 = vector.shape_cast %246 : vector<128xf32> to vector<1x128xf32>
    %252 = vector.broadcast %251 : vector<1x128xf32> to vector<4x128xf32>
    %253 = arith.mulf %252, %1 : vector<4x128xf32>
    %c0_133 = arith.constant 0 : index
    %c0_134 = arith.constant 0 : index
    %c0_135 = arith.constant 0 : index
    %254 = vector.load %arg11[%c0_133, %c0_134, %c0_135] : memref<1x4x128xf32, #tpu.memory_space<vmem>>, vector<1x4x128xf32>
    %255 = vector.shape_cast %254 : vector<1x4x128xf32> to vector<4x128xf32>
    %256 = vector.shape_cast %253 : vector<4x128xf32> to vector<1x4x128xf32>
    tpu.vector_store %arg11[%c0_133, %c0_134, %c0_135], %256 {strides = array<i32>} : memref<1x4x128xf32, #tpu.memory_space<vmem>>, vector<1x4x128xf32>,
    return
  }
  func.func @transform_0(%arg0: i32, %arg1: i32, %arg2: memref<16xi32, #tpu.memory_space<smem>>, %arg3: memref<16xf32, #tpu.memory_space<smem>>, %arg4: memref<2xf32, #tpu.memory_space<smem>>, %arg5: memref<1xf32, #tpu.memory_space<smem>>) -> (i32, i32, i32) {
    %c0_i32 = arith.constant 0 : i32
    %c0_i32_0 = arith.constant 0 : i32
    return %arg0, %c0_i32, %arg1 : i32, i32, i32
  }
  func.func @transform_1(%arg0: i32, %arg1: i32, %arg2: memref<16xi32, #tpu.memory_space<smem>>, %arg3: memref<16xf32, #tpu.memory_space<smem>>, %arg4: memref<2xf32, #tpu.memory_space<smem>>, %arg5: memref<1xf32, #tpu.memory_space<smem>>) -> (i32, i32, i32) {
    %c0_i32 = arith.constant 0 : i32
    %c0_i32_0 = arith.constant 0 : i32
    %c0_i32_1 = arith.constant 0 : i32
    return %arg0, %c0_i32, %c0_i32_0 : i32, i32, i32
  }
  func.func @transform_2(%arg0: i32, %arg1: i32, %arg2: memref<16xi32, #tpu.memory_space<smem>>, %arg3: memref<16xf32, #tpu.memory_space<smem>>, %arg4: memref<2xf32, #tpu.memory_space<smem>>, %arg5: memref<1xf32, #tpu.memory_space<smem>>) -> (i32, i32) {
    %c0_i32 = arith.constant 0 : i32
    %c0_i32_0 = arith.constant 0 : i32
    %c0_i32_1 = arith.constant 0 : i32
    return %c0_i32, %c0_i32_0 : i32, i32
  }
  func.func @transform_3(%arg0: i32, %arg1: i32, %arg2: memref<16xi32, #tpu.memory_space<smem>>, %arg3: memref<16xf32, #tpu.memory_space<smem>>, %arg4: memref<2xf32, #tpu.memory_space<smem>>, %arg5: memref<1xf32, #tpu.memory_space<smem>>) -> (i32, i32) {
    %c0_i32 = arith.constant 0 : i32
    %c0_i32_0 = arith.constant 0 : i32
    %c0_i32_1 = arith.constant 0 : i32
    return %c0_i32, %c0_i32_0 : i32, i32
  }
  func.func @transform_4(%arg0: i32, %arg1: i32, %arg2: memref<16xi32, #tpu.memory_space<smem>>, %arg3: memref<16xf32, #tpu.memory_space<smem>>, %arg4: memref<2xf32, #tpu.memory_space<smem>>, %arg5: memref<1xf32, #tpu.memory_space<smem>>) -> (i32, i32) {
    %c0_i32 = arith.constant 0 : i32
    %c0_i32_0 = arith.constant 0 : i32
    %c0_i32_1 = arith.constant 0 : i32
    return %c0_i32, %c0_i32_0 : i32, i32
  }
  func.func @transform_5(%arg0: i32, %arg1: i32, %arg2: memref<16xi32, #tpu.memory_space<smem>>, %arg3: memref<16xf32, #tpu.memory_space<smem>>, %arg4: memref<2xf32, #tpu.memory_space<smem>>, %arg5: memref<1xf32, #tpu.memory_space<smem>>) -> (i32, i32, i32) {
    %c0_i32 = arith.constant 0 : i32
    %c0_i32_0 = arith.constant 0 : i32
    return %arg0, %c0_i32, %arg1 : i32, i32, i32
  }
  func.func @transform_6(%arg0: i32, %arg1: i32, %arg2: memref<16xi32, #tpu.memory_space<smem>>, %arg3: memref<16xf32, #tpu.memory_space<smem>>, %arg4: memref<2xf32, #tpu.memory_space<smem>>, %arg5: memref<1xf32, #tpu.memory_space<smem>>) -> (i32, i32, i32) {
    %c0_i32 = arith.constant 0 : i32
    %c0_i32_0 = arith.constant 0 : i32
    return %arg0, %c0_i32, %arg1 : i32, i32, i32
  }
}

</mosaic_0001>

<llo_original>
// kernel: tpu_custom_call.1
$region0: #{tpu_custom_call.1}
  #allocation0 [shape = 'u32[]', space=smem, size = 0x4, offset = 0x4, fixed_abs, tag = 'smem constant byte address 0x4 - core index']
  #allocation1 [shape = 'u32[144,128]{1,0:T(1,128)}', space=vmem, size = 0x12000, scoped, tag = 'internal scratch']
  #allocation2 [shape = 'f32[8,2,16]{2,1,0:T(2,128)}', space=vmem, size = 0x2000, scoped, tag = 'scratch operand']
  #allocation3 [shape = 'f32[2,128]{1,0:T(2,128)}', space=vmem, size = 0x400, scoped, tag = 'scratch operand']
  #allocation4 [shape = 's32[1]{0}', space=sflag, size = 0x4, scoped, tag = 'scoped memory for tpu_custom_call.1']
  #allocation5 [shape = 'u8[512]{0}', space=smem, size = 0x200, scoped, tag = 'prefetched SMEM operand 0']
  #allocation6 [shape = 'u8[512]{0}', space=smem, size = 0x200, scoped, tag = 'prefetched SMEM operand 1']
  #allocation7 [shape = 'u8[512]{0}', space=smem, size = 0x200, scoped, tag = 'prefetched SMEM operand 2']
  #allocation8 [shape = 'f32[1]{0:T(128)S(6)}', space=smem, size = 0x200, scoped, tag = 'prefetched SMEM operand 3']
  %s0 = inlined_call_operand.hbm [shape: s32[16], index: 0, kind: input, shape index: {}]
  %s1 = inlined_call_operand.hbm [shape: f32[16], index: 1, kind: input, shape index: {}]
  %s2 = inlined_call_operand.hbm [shape: f32[2], index: 2, kind: input, shape index: {}]
  %s3 = inlined_call_operand.<no memory space> [shape: f32[1], index: 3, kind: input, shape index: {}]
  %s4 = inlined_call_operand.hbm [shape: f32[2,4,256], index: 4, kind: input, shape index: {}]
  %s5 = inlined_call_operand.vmem [shape: f32[2,8,64], index: 5, kind: input, shape index: {}]
  %s6 = inlined_call_operand.vmem [shape: f32[2,4], index: 6, kind: input, shape index: {}]
  %s7 = inlined_call_operand.hbm [shape: f32[2,8], index: 7, kind: input, shape index: {}]
  %s8 = inlined_call_operand.vmem [shape: f32[8,16], index: 8, kind: input, shape index: {}]
  %s9 = inlined_call_operand.hbm [shape: f32[2,4,256], index: 9, kind: output, shape index: {0}]
  %s10 = inlined_call_operand.hbm [shape: f32[2,1,256], index: 10, kind: output, shape index: {1}]
  %11 = xla_tuple %s9, %s10
  %s12 = sld [smem:[#allocation0]]
  $region69: #{tpu_custom_call.1} parent=0
    _
  %s14 = ssub.s32 1, %s12
  %s15 = scalar_select 0, %s14, %s12
  %17 = dma.hbm_to_smem %s0, 16, [#allocation5], [#allocation4]
  %19 = dma.hbm_to_smem %s1, 16, [#allocation6], [#allocation4]
  %21 = dma.hbm_to_smem %s2, 16, [#allocation7], [#allocation4]
  %22 = sst [smem:[#allocation8]] %s3
  %23 = dma.done [#allocation4], 48
  %24 = sfence
  $region1: #{tpu_custom_call.1} parent=0
    #allocation9 [shape = 'u8[4096]{0}', space=vmem, size = 0x1000, scoped, tag = 'input window, operand 4']
    #allocation10 [shape = 's32[2]{0}', space=sflag, size = 0x8, scoped, tag = 'scoped memory for tpu_custom_call.1']
    #allocation11 [shape = 's32[2]{0}', space=sflag, size = 0x8, scoped, tag = 'scoped memory for tpu_custom_call.1']
    #allocation12 [shape = 'u8[1024]{0}', space=vmem, size = 0x400, scoped, tag = 'input window, operand 7, single buffered']
    #allocation13 [shape = 's32[1]{0}', space=sflag, size = 0x4, scoped, tag = 'scoped memory for tpu_custom_call.1']
    #allocation14 [shape = 'u8[4096]{0}', space=vmem, size = 0x1000, scoped, tag = 'output window, operand 0']
    #allocation15 [shape = 'u8[1024]{0}', space=vmem, size = 0x400, scoped, tag = 'output window, operand 1']
    #allocation16 [shape = 's32[2]{0}', space=sflag, size = 0x8, scoped, tag = 'scoped memory for tpu_custom_call.1']
    %25 = vsyncpa [#allocation10], 0
    %s26 = scalar_lea.sflag [#allocation10], 1
    %27 = vsyncpa %s26, 0
    %28 = vsyncpa [#allocation13], 0
    %29 = vsyncpa [#allocation11], 0
    %s30 = scalar_lea.sflag [#allocation11], 1
    %31 = vsyncpa %s30, 0
    %32 = vsyncpa [#allocation16], 0
    %s33 = scalar_lea.sflag [#allocation16], 1
    %34 = vsyncpa %s33, 0
    loop: start=0, step=1, limit=6
    $region2: #{tpu_custom_call.1} parent=1 // loop_pre_header
      _
    $region3: #{tpu_custom_call.1} parent=1 // loop_header
      %s36 = sphi 0, %s40
      %p37 = scmp.ge.s32.totalorder %s36, 6
      %s43 = sphi 0, %s55
      %s44 = sphi 0, %s51
      %s45 = sphi 0, %s43
      %s46 = sphi 0, %s44
      %s47 = sphi 0, %s45
      %s48 = sphi 0, %s46
      %s60 = sphi 0, %s62
      %s63 = sphi 0, %s60
      %s64 = sphi 0, %s63
      %s80 = sphi 0, %s64
      %s86 = sphi 0, %s88
      %s89 = sphi 0, %s86
      %s90 = sphi 0, %s89
      %s106 = sphi 0, %s90
      %s110 = sphi 0, %s110
      %s112 = sphi 0, %s110
      %s113 = sphi 0, %s112
      %s127 = sphi 0, %s113
      %s131 = sphi 0, %s131
      %s133 = sphi 0, %s131
      %s134 = sphi 0, %s133
      %s148 = sphi 0, %s134
      %s152 = sphi 0, %s152
      %s154 = sphi 0, %s152
      %s155 = sphi 0, %s154
      %s169 = sphi 0, %s155
      %s177 = sphi 0, %s179
      %s180 = sphi 0, %s177
      %s181 = sphi 0, %s180
      %s197 = sphi 0, %s181
      %s205 = sphi 0, %s207
      %s208 = sphi 0, %s205
      %s209 = sphi 0, %s208
      %s225 = sphi 0, %s209
    $region4: #{tpu_custom_call.1} parent=1 // loop_header_branch
      %39 = sbr.rel (%p37) target = $region8
    $region5: #{tpu_custom_call.1} parent=1 // loop_body
      %s41 = ssub.s32 %s36, 1
      %s42 = ssub.s32 %s36, 2
      %s49 = sadd.s32 1, %s44
      %p50 = scmp.ge.s32.totalorder %s49, 2
      %s51 = scalar_select %p50, 0, %s49
      %s52 = sadd.s32 1, %s43
      %s53 = scalar_select %p50, %s52, %s43
      %p54 = scmp.ge.s32.totalorder %s53, 2
      %s55 = scalar_select %p54, 0, %s53
      %s56 = ssub.s32 %s43, %s55
      %s57 = ssub.s32 %s44, %s51
      %s58 = sor.u32 %s56, %s57
      %p59 = scmp.eq.s32.totalorder %s58, 0
      %s61 = sadd.s32 %s60, 1
      %s62 = scalar_select %p59, %s60, %s61
      %p65 = pneg %p59
      %p66 = scmp.eq.s32.totalorder %s36, 3
      %p67 = por %p65, %p66
      %p68 = scmp.ne.s32.totalorder %s60, %s63
      %p69 = scmp.eq.s32.totalorder %s36, 0
      %p70 = por %p68, %p69
      %p71 = scmp.ne.s32.totalorder %s60, %s63
      %p72 = scmp.eq.s32.totalorder %s41, 3
      %p73 = por %p71, %p72
      %p74 = scmp.ne.s32.totalorder %s63, %s64
      %p75 = scmp.eq.s32.totalorder %s41, 0
      %p76 = por %p74, %p75
      %p77 = scmp.ne.s32.totalorder %s63, %s64
      %p78 = scmp.eq.s32.totalorder %s42, 3
      %p79 = por %p77, %p78
      %p81 = scmp.ne.s32.totalorder %s64, %s80
      %p82 = scmp.eq.s32.totalorder %s42, 0
      %p83 = por %p81, %p82
      %s84 = ssub.s32 %s43, %s55
      %p85 = scmp.eq.s32.totalorder %s84, 0
      %s87 = sadd.s32 %s86, 1
      %s88 = scalar_select %p85, %s86, %s87
      %p91 = pneg %p85
      %p92 = scmp.eq.s32.totalorder %s36, 3
      %p93 = por %p91, %p92
      %p94 = scmp.ne.s32.totalorder %s86, %s89
      %p95 = scmp.eq.s32.totalorder %s36, 0
      %p96 = por %p94, %p95
      %p97 = scmp.ne.s32.totalorder %s86, %s89
      %p98 = scmp.eq.s32.totalorder %s41, 3
      %p99 = por %p97, %p98
      %p100 = scmp.ne.s32.totalorder %s89, %s90
      %p101 = scmp.eq.s32.totalorder %s41, 0
      %p102 = por %p100, %p101
      %p103 = scmp.ne.s32.totalorder %s89, %s90
      %p104 = scmp.eq.s32.totalorder %s42, 3
      %p105 = por %p103, %p104
      %p107 = scmp.ne.s32.totalorder %s90, %s106
      %p108 = scmp.eq.s32.totalorder %s42, 0
      %p109 = por %p107, %p108
      %s111 = sadd.s32 %s110, 1
      %p114 = scmp.eq.s32.totalorder %s36, 3
      %p115 = scmp.ne.s32.totalorder %s110, %s112
      %p116 = scmp.eq.s32.totalorder %s36, 0
      %p117 = por %p115, %p116
      %p118 = scmp.ne.s32.totalorder %s110, %s112
      %p119 = scmp.eq.s32.totalorder %s41, 3
      %p120 = por %p118, %p119
      %p121 = scmp.ne.s32.totalorder %s112, %s113
      %p122 = scmp.eq.s32.totalorder %s41, 0
      %p123 = por %p121, %p122
      %p124 = scmp.ne.s32.totalorder %s112, %s113
      %p125 = scmp.eq.s32.totalorder %s42, 3
      %p126 = por %p124, %p125
      %p128 = scmp.ne.s32.totalorder %s113, %s127
      %p129 = scmp.eq.s32.totalorder %s42, 0
      %p130 = por %p128, %p129
      %s132 = sadd.s32 %s131, 1
      %p135 = scmp.eq.s32.totalorder %s36, 3
      %p136 = scmp.ne.s32.totalorder %s131, %s133
      %p137 = scmp.eq.s32.totalorder %s36, 0
      %p138 = por %p136, %p137
      %p139 = scmp.ne.s32.totalorder %s131, %s133
      %p140 = scmp.eq.s32.totalorder %s41, 3
      %p141 = por %p139, %p140
      %p142 = scmp.ne.s32.totalorder %s133, %s134
      %p143 = scmp.eq.s32.totalorder %s41, 0
      %p144 = por %p142, %p143
      %p145 = scmp.ne.s32.totalorder %s133, %s134
      %p146 = scmp.eq.s32.totalorder %s42, 3
      %p147 = por %p145, %p146
      %p149 = scmp.ne.s32.totalorder %s134, %s148
      %p150 = scmp.eq.s32.totalorder %s42, 0
      %p151 = por %p149, %p150
      %s153 = sadd.s32 %s152, 1
      %p156 = scmp.eq.s32.totalorder %s36, 3
      %p157 = scmp.ne.s32.totalorder %s152, %s154
      %p158 = scmp.eq.s32.totalorder %s36, 0
      %p159 = por %p157, %p158
      %p160 = scmp.ne.s32.totalorder %s152, %s154
      %p161 = scmp.eq.s32.totalorder %s41, 3
      %p162 = por %p160, %p161
      %p163 = scmp.ne.s32.totalorder %s154, %s155
      %p164 = scmp.eq.s32.totalorder %s41, 0
      %p165 = por %p163, %p164
      %p166 = scmp.ne.s32.totalorder %s154, %s155
      %p167 = scmp.eq.s32.totalorder %s42, 3
      %p168 = por %p166, %p167
      %p170 = scmp.ne.s32.totalorder %s155, %s169
      %p171 = scmp.eq.s32.totalorder %s42, 0
      %p172 = por %p170, %p171
      %s173 = ssub.s32 %s43, %s55
      %s174 = ssub.s32 %s44, %s51
      %s175 = sor.u32 %s173, %s174
      %p176 = scmp.eq.s32.totalorder %s175, 0
      %s178 = sadd.s32 %s177, 1
      %s179 = scalar_select %p176, %s177, %s178
      %p182 = pneg %p176
      %p183 = scmp.eq.s32.totalorder %s36, 3
      %p184 = por %p182, %p183
      %p185 = scmp.ne.s32.totalorder %s177, %s180
      %p186 = scmp.eq.s32.totalorder %s36, 0
      %p187 = por %p185, %p186
      %p188 = scmp.ne.s32.totalorder %s177, %s180
      %p189 = scmp.eq.s32.totalorder %s41, 3
      %p190 = por %p188, %p189
      %p191 = scmp.ne.s32.totalorder %s180, %s181
      %p192 = scmp.eq.s32.totalorder %s41, 0
      %p193 = por %p191, %p192
      %p194 = scmp.ne.s32.totalorder %s180, %s181
      %p195 = scmp.eq.s32.totalorder %s42, 3
      %p196 = por %p194, %p195
      %p198 = scmp.ne.s32.totalorder %s181, %s197
      %p199 = scmp.eq.s32.totalorder %s42, 0
      %p200 = por %p198, %p199
      %s201 = ssub.s32 %s43, %s55
      %s202 = ssub.s32 %s44, %s51
      %s203 = sor.u32 %s201, %s202
      %p204 = scmp.eq.s32.totalorder %s203, 0
      %s206 = sadd.s32 %s205, 1
      %s207 = scalar_select %p204, %s205, %s206
      %p210 = pneg %p204
      %p211 = scmp.eq.s32.totalorder %s36, 3
      %p212 = por %p210, %p211
      %p213 = scmp.ne.s32.totalorder %s205, %s208
      %p214 = scmp.eq.s32.totalorder %s36, 0
      %p215 = por %p213, %p214
      %p216 = scmp.ne.s32.totalorder %s205, %s208
      %p217 = scmp.eq.s32.totalorder %s41, 3
      %p218 = por %p216, %p217
      %p219 = scmp.ne.s32.totalorder %s208, %s209
      %p220 = scmp.eq.s32.totalorder %s41, 0
      %p221 = por %p219, %p220
      %p222 = scmp.ne.s32.totalorder %s208, %s209
      %p223 = scmp.eq.s32.totalorder %s42, 3
      %p224 = por %p222, %p223
      %p226 = scmp.ne.s32.totalorder %s209, %s225
      %p227 = scmp.eq.s32.totalorder %s42, 0
      %p228 = por %p226, %p227
      %p229 = scmp.le.s32.totalorder 1, %s36
      %p230 = scmp.lt.s32.totalorder %s36, 5
      %p231 = pnand %p229, %p230
      %p232 = pneg %p231
      // Predicated region
      $region9: #{tpu_custom_call.1} parent=5 // pred_check
        _
      $region10: #{tpu_custom_call.1} parent=5 // pred_check_branch
        %234 = sbr.rel (%p231) target = $region12
      $region11: #{tpu_custom_call.1} parent=5 // pred_region
        %s235 = ssub.s32 %s36, 1
        // Predicated region
        $region13: #{tpu_custom_call.1} parent=11 // pred_check
          %p236 = pneg %p123
        $region14: #{tpu_custom_call.1} parent=11 // pred_check_branch
          %238 = sbr.rel (%p236) target = $region16
        $region15: #{tpu_custom_call.1} parent=11 // pred_region
          _
        $region16: #{tpu_custom_call.1} parent=11 // pred_fallthru
          _
        // Predicated region
        $region17: #{tpu_custom_call.1} parent=11 // pred_check
          %p239 = pneg %p144
        $region18: #{tpu_custom_call.1} parent=11 // pred_check_branch
          %241 = sbr.rel (%p239) target = $region20
        $region19: #{tpu_custom_call.1} parent=11 // pred_region
          %s243 = ssub.s32 32, 32
          %244 = vsyncadd [#allocation13], %s243
          %s246 = sshll.u32 [#allocation12], 4
          %s247 = int_to_ptr.vmem [resolvable:$true] %s246
          %249 = dma.hbm_to_vmem [thread:$0]  %s7, 32, %s247, [#allocation13]
        $region20: #{tpu_custom_call.1} parent=11 // pred_fallthru
          _
        // Predicated region
        $region21: #{tpu_custom_call.1} parent=11 // pred_check
          %p250 = pneg %p165
        $region22: #{tpu_custom_call.1} parent=11 // pred_check_branch
          %252 = sbr.rel (%p250) target = $region24
        $region23: #{tpu_custom_call.1} parent=11 // pred_region
          _
        $region24: #{tpu_custom_call.1} parent=11 // pred_fallthru
          _
      $region12: #{tpu_custom_call.1} parent=5 // pred_fallthru
        _
      %p253 = scmp.lt.s32.totalorder %s36, 4
      // Predicated region
      $region25: #{tpu_custom_call.1} parent=5 // pred_check
        %p254 = pneg %p253
      $region26: #{tpu_custom_call.1} parent=5 // pred_check_branch
        %256 = sbr.rel (%p254) target = $region28
      $region27: #{tpu_custom_call.1} parent=5 // pred_region
        // Predicated region
        $region29: #{tpu_custom_call.1} parent=27 // pred_check
          %p257 = pneg %p70
        $region30: #{tpu_custom_call.1} parent=27 // pred_check_branch
          %259 = sbr.rel (%p257) target = $region32
        $region31: #{tpu_custom_call.1} parent=27 // pred_region
          %s260 = sand.u32 %s60, 1
          %s261 = scalar_lea.sflag [#allocation10], %s260
          %s262 = sand.u32 %s60, 1
          %s263 = smul.addr %s262, 4
          %s264 = scalar_lea.vmem [#allocation9], %s263
          %s266 = ssub.s32 64, 64
          %267 = vsyncadd %s261, %s266
          %s268 = smul.addr %s43, 2
          %s269 = sadd.s32 %s44, %s268
          %s270 = smul.addr %s269, 64
          %s271 = scalar_lea.hbm %s4, %s270
          %s273 = sshll.u32 %s264, 4
          %s274 = int_to_ptr.vmem [resolvable:$true] %s273
          %276 = dma.hbm_to_vmem [thread:$0]  %s271, 64, %s274, %s261
        $region32: #{tpu_custom_call.1} parent=27 // pred_fallthru
          _
        // Predicated region
        $region33: #{tpu_custom_call.1} parent=27 // pred_check
          %p277 = pneg %p96
        $region34: #{tpu_custom_call.1} parent=27 // pred_check_branch
          %279 = sbr.rel (%p277) target = $region36
        $region35: #{tpu_custom_call.1} parent=27 // pred_region
          %p280 = scmp.lt.s32.totalorder %s43, 1
          %s281 = scalar_select %p280, %s43, 1
          %s282 = smul.addr %s281, 8
          %s283 = scalar_lea.vmem %s5, %s282
        $region36: #{tpu_custom_call.1} parent=27 // pred_fallthru
          _
      $region28: #{tpu_custom_call.1} parent=5 // pred_fallthru
        _
      %p284 = scmp.le.s32.totalorder 1, %s36
      %p285 = scmp.lt.s32.totalorder %s36, 5
      %p286 = pnand %p284, %p285
      %p287 = pneg %p286
      // Predicated region
      $region37: #{tpu_custom_call.1} parent=5 // pred_check
        _
      $region38: #{tpu_custom_call.1} parent=5 // pred_check_branch
        %289 = sbr.rel (%p286) target = $region40
      $region39: #{tpu_custom_call.1} parent=5 // pred_region
        %s290 = ssub.s32 %s36, 1
        %s291 = sand.u32 %s63, 1
        %s292 = scalar_lea.sflag [#allocation10], %s291
        %s293 = sand.u32 %s63, 1
        %s294 = smul.addr %s293, 4
        %s295 = scalar_lea.vmem [#allocation9], %s294
        // Predicated region
        $region41: #{tpu_custom_call.1} parent=39 // pred_check
          %p296 = pneg %p76
        $region42: #{tpu_custom_call.1} parent=39 // pred_check_branch
          %298 = sbr.rel (%p296) target = $region44
        $region43: #{tpu_custom_call.1} parent=39 // pred_region
          %299 = dma.done %s292, 64
        $region44: #{tpu_custom_call.1} parent=39 // pred_fallthru
          _
        // Predicated region
        $region45: #{tpu_custom_call.1} parent=39 // pred_check
          %p300 = pneg %p144
        $region46: #{tpu_custom_call.1} parent=39 // pred_check_branch
          %302 = sbr.rel (%p300) target = $region48
        $region47: #{tpu_custom_call.1} parent=39 // pred_region
          %303 = dma.done [#allocation13], 32
        $region48: #{tpu_custom_call.1} parent=39 // pred_fallthru
          _
        %s304 = sand.u32 %s63, 1
        %s305 = scalar_lea.sflag [#allocation10], %s304
        %s306 = sand.u32 %s63, 1
        %s307 = smul.addr %s306, 4
        %s308 = scalar_lea.vmem [#allocation9], %s307
        %p309 = pneg %p76
        %p310 = pneg %p73
        %p311 = scmp.lt.s32.totalorder %s45, 1
        %s312 = scalar_select %p311, %s45, 1
        %s313 = smul.addr %s312, 8
        %s314 = scalar_lea.vmem %s5, %s313
        %p315 = pneg %p102
        %p316 = pneg %p99
        %p317 = pneg %p123
        %p318 = pneg %p120
        %p319 = pneg %p144
        %p320 = pneg %p141
        %p321 = pneg %p165
        %p322 = pneg %p162
        %p323 = pneg %p193
        %p324 = pneg %p190
        %s325 = sand.u32 %s180, 1
        %s326 = scalar_lea.sflag [#allocation11], %s325
        %s327 = sand.u32 %s180, 1
        %s328 = smul.addr %s327, 4
        %s329 = scalar_lea.vmem [#allocation14], %s328
        %p330 = pneg %p221
        %p331 = pneg %p218
        %s332 = sand.u32 %s208, 1
        %s333 = scalar_lea.sflag [#allocation16], %s332
        %s334 = sand.u32 %s208, 1
        %s335 = scalar_lea.vmem [#allocation15], %s334
        %p336 = scmp.lt.s32.totalorder %s45, 1
        %s337 = scalar_select %p336, %s45, 1
        %s338 = smul.addr %s337, 8
        %s339 = scalar_lea.vmem %s5, %s338
        %v340 = vld [vmem:[%s295] sm:$0xf]
        %v341 = vld [vmem:[%s6] sm:$0x3]
        %v342 = vld [vmem:[#allocation12] sm:$0x3]
        %v343 = vld [vmem:[%s339] sm:$0xff]
        %vm344 = vcmask 64512
        %v346 = vsel %vm344, %v342, 0
        %348 = vmatprep.subr.mxu0 0.0
        %349 = vmatpush1.msra.mxu0 %v343
        %350 = vmatprep.subr.mxu0 0.0
        %351 = vmatpush1.msra.mxu0 0.0
        %352 = vmatprep.subr.mxu0 0.0
        %353 = vmatpush1.msra.mxu0 0.0
        %354 = vmatprep.subr.mxu0 0.0
        %355 = vmatpush1.msra.mxu0 0.0
        %356 = vmatprep.subr.mxu0 0.0
        %357 = vmatpush1.msra.mxu0 0.0
        %358 = vmatprep.subr.mxu0 0.0
        %359 = vmatpush1.msra.mxu0 0.0
        %360 = vmatprep.subr.mxu0 0.0
        %361 = vmatpush1.msra.mxu0 0.0
        %362 = vmatprep.subr.mxu0 0.0
        %363 = vmatpush1.msra.mxu0 0.0
        %364 = vmatprep.subr.mxu0 0.0
        %365 = vmatpush1.msra.mxu0 0.0
        %366 = vmatprep.subr.mxu0 0.0
        %367 = vmatpush1.msra.mxu0 0.0
        %368 = vmatprep.subr.mxu0 0.0
        %369 = vmatpush1.msra.mxu0 0.0
        %370 = vmatprep.subr.mxu0 0.0
        %371 = vmatpush1.msra.mxu0 0.0
        %372 = vmatprep.subr.mxu0 0.0
        %373 = vmatpush1.msra.mxu0 0.0
        %374 = vmatprep.subr.mxu0 0.0
        %375 = vmatpush1.msra.mxu0 0.0
        %376 = vmatprep.subr.mxu0 0.0
        %377 = vmatpush1.msra.mxu0 0.0
        %378 = vmatprep.subr.mxu0 0.0
        %379 = vmatpush1.msra.mxu0 0.0
        %380 = vmatprep.subr.mxu0 0.0
        %381 = vmatpush1.msra.mxu0 0.0
        %382 = vmatprep.subr.mxu0 0.0
        %383 = vmatpush1.msra.mxu0 0.0
        %384 = vmatprep.subr.mxu0 0.0
        %385 = vmatpush1.msra.mxu0 0.0
        %386 = vmatprep.subr.mxu0 0.0
        %387 = vmatpush1.msra.mxu0 0.0
        %388 = vmatprep.subr.mxu0 0.0
        %389 = vmatpush1.msra.mxu0 0.0
        %390 = vmatprep.subr.mxu0 0.0
        %391 = vmatpush1.msra.mxu0 0.0
        %392 = vmatprep.subr.mxu0 0.0
        %393 = vmatpush1.msra.mxu0 0.0
        %394 = vmatprep.subr.mxu0 0.0
        %395 = vmatpush1.msra.mxu0 0.0
        %396 = vmatprep.subr.mxu0 0.0
        %397 = vmatpush1.msra.mxu0 0.0
        %398 = vmatprep.subr.mxu0 0.0
        %399 = vmatpush1.msra.mxu0 0.0
        %400 = vmatprep.subr.mxu0 0.0
        %401 = vmatpush1.msra.mxu0 0.0
        %402 = vmatprep.subr.mxu0 0.0
        %403 = vmatpush1.msra.mxu0 0.0
        %404 = vmatprep.subr.mxu0 0.0
        %405 = vmatpush1.msra.mxu0 0.0
        %406 = vmatprep.subr.mxu0 0.0
        %407 = vmatpush1.msra.mxu0 0.0
        %408 = vmatprep.subr.mxu0 0.0
        %409 = vmatpush1.msra.mxu0 0.0
        %410 = vmatprep.subr.mxu0 0.0
        %411 = vmatpush1.msra.mxu0 0.0
        %412 = vmatprep.mubr.f32.mxu0 0.0
        %413 = vmatmul.mubr.f32.gmra.mrb[0].mxu0 %v346
        %v414 = vpop.f32.mrb[0].mxu0
        %v415 = vadd.f32 0.0, %v414
        %v416 = vpop.f32.mrb[0].mxu0
        %417 = vdwg.mxu0
        %v418 = vld [vmem:[%s8] sm:$0xff]
        %v420 = vsel %vm344, %v415, 0
        %422 = vmatprep.subr.mxu0 0.0
        %423 = vmatpush1.msra.mxu0 %v418
        %424 = vmatprep.subr.mxu0 0.0
        %425 = vmatpush1.msra.mxu0 0.0
        %426 = vmatprep.subr.mxu0 0.0
        %427 = vmatpush1.msra.mxu0 0.0
        %428 = vmatprep.subr.mxu0 0.0
        %429 = vmatpush1.msra.mxu0 0.0
        %430 = vmatprep.subr.mxu0 0.0
        %431 = vmatpush1.msra.mxu0 0.0
        %432 = vmatprep.subr.mxu0 0.0
        %433 = vmatpush1.msra.mxu0 0.0
        %434 = vmatprep.subr.mxu0 0.0
        %435 = vmatpush1.msra.mxu0 0.0
        %436 = vmatprep.subr.mxu0 0.0
        %437 = vmatpush1.msra.mxu0 0.0
        %438 = vmatprep.subr.mxu0 0.0
        %439 = vmatpush1.msra.mxu0 0.0
        %440 = vmatprep.subr.mxu0 0.0
        %441 = vmatpush1.msra.mxu0 0.0
        %442 = vmatprep.subr.mxu0 0.0
        %443 = vmatpush1.msra.mxu0 0.0
        %444 = vmatprep.subr.mxu0 0.0
        %445 = vmatpush1.msra.mxu0 0.0
        %446 = vmatprep.subr.mxu0 0.0
        %447 = vmatpush1.msra.mxu0 0.0
        %448 = vmatprep.subr.mxu0 0.0
        %449 = vmatpush1.msra.mxu0 0.0
        %450 = vmatprep.subr.mxu0 0.0
        %451 = vmatpush1.msra.mxu0 0.0
        %452 = vmatprep.subr.mxu0 0.0
        %453 = vmatpush1.msra.mxu0 0.0
        %454 = vmatprep.subr.mxu0 0.0
        %455 = vmatpush1.msra.mxu0 0.0
        %456 = vmatprep.subr.mxu0 0.0
        %457 = vmatpush1.msra.mxu0 0.0
        %458 = vmatprep.subr.mxu0 0.0
        %459 = vmatpush1.msra.mxu0 0.0
        %460 = vmatprep.subr.mxu0 0.0
        %461 = vmatpush1.msra.mxu0 0.0
        %462 = vmatprep.subr.mxu0 0.0
        %463 = vmatpush1.msra.mxu0 0.0
        %464 = vmatprep.subr.mxu0 0.0
        %465 = vmatpush1.msra.mxu0 0.0
        %466 = vmatprep.subr.mxu0 0.0
        %467 = vmatpush1.msra.mxu0 0.0
        %468 = vmatprep.subr.mxu0 0.0
        %469 = vmatpush1.msra.mxu0 0.0
        %470 = vmatprep.subr.mxu0 0.0
        %471 = vmatpush1.msra.mxu0 0.0
        %472 = vmatprep.subr.mxu0 0.0
        %473 = vmatpush1.msra.mxu0 0.0
        %474 = vmatprep.subr.mxu0 0.0
        %475 = vmatpush1.msra.mxu0 0.0
        %476 = vmatprep.subr.mxu0 0.0
        %477 = vmatpush1.msra.mxu0 0.0
        %478 = vmatprep.subr.mxu0 0.0
        %479 = vmatpush1.msra.mxu0 0.0
        %480 = vmatprep.subr.mxu0 0.0
        %481 = vmatpush1.msra.mxu0 0.0
        %482 = vmatprep.subr.mxu0 0.0
        %483 = vmatpush1.msra.mxu0 0.0
        %484 = vmatprep.subr.mxu0 0.0
        %485 = vmatpush1.msra.mxu0 0.0
        %486 = vmatprep.mubr.f32.mxu0 0.0
        %487 = vmatmul.mubr.f32.gmra.mrb[0].mxu0 %v420
        %v488 = vpop.f32.mrb[0].mxu0
        %v489 = vadd.f32 0.0, %v488
        %v490 = vpop.f32.mrb[0].mxu0
        %491 = vdwg.mxu0
        %vm492 = vcmask 123904
        %493 = vst.msk [vmem:[#allocation2] sm:$0x3] %vm492, %v489
        %v494 = vld [vmem:[%s8] sm:$0xff]
        %495 = vrot.lane.b32.xlu0 %v415, 120
        %v496 = vpop.permute.xlu0 %495
        %v497 = vsel %vm344, %v496, 0
        %499 = vmatprep.subr.mxu0 0.0
        %500 = vmatpush1.msra.mxu0 %v494
        %501 = vmatprep.subr.mxu0 0.0
        %502 = vmatpush1.msra.mxu0 0.0
        %503 = vmatprep.subr.mxu0 0.0
        %504 = vmatpush1.msra.mxu0 0.0
        %505 = vmatprep.subr.mxu0 0.0
        %506 = vmatpush1.msra.mxu0 0.0
        %507 = vmatprep.subr.mxu0 0.0
        %508 = vmatpush1.msra.mxu0 0.0
        %509 = vmatprep.subr.mxu0 0.0
        %510 = vmatpush1.msra.mxu0 0.0
        %511 = vmatprep.subr.mxu0 0.0
        %512 = vmatpush1.msra.mxu0 0.0
        %513 = vmatprep.subr.mxu0 0.0
        %514 = vmatpush1.msra.mxu0 0.0
        %515 = vmatprep.subr.mxu0 0.0
        %516 = vmatpush1.msra.mxu0 0.0
        %517 = vmatprep.subr.mxu0 0.0
        %518 = vmatpush1.msra.mxu0 0.0
        %519 = vmatprep.subr.mxu0 0.0
        %520 = vmatpush1.msra.mxu0 0.0
        %521 = vmatprep.subr.mxu0 0.0
        %522 = vmatpush1.msra.mxu0 0.0
        %523 = vmatprep.subr.mxu0 0.0
        %524 = vmatpush1.msra.mxu0 0.0
        %525 = vmatprep.subr.mxu0 0.0
        %526 = vmatpush1.msra.mxu0 0.0
        %527 = vmatprep.subr.mxu0 0.0
        %528 = vmatpush1.msra.mxu0 0.0
        %529 = vmatprep.subr.mxu0 0.0
        %530 = vmatpush1.msra.mxu0 0.0
        %531 = vmatprep.subr.mxu0 0.0
        %532 = vmatpush1.msra.mxu0 0.0
        %533 = vmatprep.subr.mxu0 0.0
        %534 = vmatpush1.msra.mxu0 0.0
        %535 = vmatprep.subr.mxu0 0.0
        %536 = vmatpush1.msra.mxu0 0.0
        %537 = vmatprep.subr.mxu0 0.0
        %538 = vmatpush1.msra.mxu0 0.0
        %539 = vmatprep.subr.mxu0 0.0
        %540 = vmatpush1.msra.mxu0 0.0
        %541 = vmatprep.subr.mxu0 0.0
        %542 = vmatpush1.msra.mxu0 0.0
        %543 = vmatprep.subr.mxu0 0.0
        %544 = vmatpush1.msra.mxu0 0.0
        %545 = vmatprep.subr.mxu0 0.0
        %546 = vmatpush1.msra.mxu0 0.0
        %547 = vmatprep.subr.mxu0 0.0
        %548 = vmatpush1.msra.mxu0 0.0
        %549 = vmatprep.subr.mxu0 0.0
        %550 = vmatpush1.msra.mxu0 0.0
        %551 = vmatprep.subr.mxu0 0.0
        %552 = vmatpush1.msra.mxu0 0.0
        %553 = vmatprep.subr.mxu0 0.0
        %554 = vmatpush1.msra.mxu0 0.0
        %555 = vmatprep.subr.mxu0 0.0
        %556 = vmatpush1.msra.mxu0 0.0
        %557 = vmatprep.subr.mxu0 0.0
        %558 = vmatpush1.msra.mxu0 0.0
        %559 = vmatprep.subr.mxu0 0.0
        %560 = vmatpush1.msra.mxu0 0.0
        %561 = vmatprep.subr.mxu0 0.0
        %562 = vmatpush1.msra.mxu0 0.0
        %563 = vmatprep.mubr.f32.mxu0 0.0
        %564 = vmatmul.mubr.f32.gmra.mrb[0].mxu0 %v497
        %v565 = vpop.f32.mrb[0].mxu0
        %v566 = vadd.f32 0.0, %v565
        %v567 = vpop.f32.mrb[0].mxu0
        %568 = vdwg.mxu0
        %s569 = scalar_lea.vmem [#allocation2], 2
        %570 = vst.msk [vmem:[%s569] sm:$0x3] %vm492, %v566
        %v571 = vld [vmem:[%s8] sm:$0xff]
        %572 = vrot.lane.b32.xlu0 %v415, 112
        %v573 = vpop.permute.xlu0 %572
        %v574 = vsel %vm344, %v573, 0
        %576 = vmatprep.subr.mxu0 0.0
        %577 = vmatpush1.msra.mxu0 %v571
        %578 = vmatprep.subr.mxu0 0.0
        %579 = vmatpush1.msra.mxu0 0.0
        %580 = vmatprep.subr.mxu0 0.0
        %581 = vmatpush1.msra.mxu0 0.0
        %582 = vmatprep.subr.mxu0 0.0
        %583 = vmatpush1.msra.mxu0 0.0
        %584 = vmatprep.subr.mxu0 0.0
        %585 = vmatpush1.msra.mxu0 0.0
        %586 = vmatprep.subr.mxu0 0.0
        %587 = vmatpush1.msra.mxu0 0.0
        %588 = vmatprep.subr.mxu0 0.0
        %589 = vmatpush1.msra.mxu0 0.0
        %590 = vmatprep.subr.mxu0 0.0
        %591 = vmatpush1.msra.mxu0 0.0
        %592 = vmatprep.subr.mxu0 0.0
        %593 = vmatpush1.msra.mxu0 0.0
        %594 = vmatprep.subr.mxu0 0.0
        %595 = vmatpush1.msra.mxu0 0.0
        %596 = vmatprep.subr.mxu0 0.0
        %597 = vmatpush1.msra.mxu0 0.0
        %598 = vmatprep.subr.mxu0 0.0
        %599 = vmatpush1.msra.mxu0 0.0
        %600 = vmatprep.subr.mxu0 0.0
        %601 = vmatpush1.msra.mxu0 0.0
        %602 = vmatprep.subr.mxu0 0.0
        %603 = vmatpush1.msra.mxu0 0.0
        %604 = vmatprep.subr.mxu0 0.0
        %605 = vmatpush1.msra.mxu0 0.0
        %606 = vmatprep.subr.mxu0 0.0
        %607 = vmatpush1.msra.mxu0 0.0
        %608 = vmatprep.subr.mxu0 0.0
        %609 = vmatpush1.msra.mxu0 0.0
        %610 = vmatprep.subr.mxu0 0.0
        %611 = vmatpush1.msra.mxu0 0.0
        %612 = vmatprep.subr.mxu0 0.0
        %613 = vmatpush1.msra.mxu0 0.0
        %614 = vmatprep.subr.mxu0 0.0
        %615 = vmatpush1.msra.mxu0 0.0
        %616 = vmatprep.subr.mxu0 0.0
        %617 = vmatpush1.msra.mxu0 0.0
        %618 = vmatprep.subr.mxu0 0.0
        %619 = vmatpush1.msra.mxu0 0.0
        %620 = vmatprep.subr.mxu0 0.0
        %621 = vmatpush1.msra.mxu0 0.0
        %622 = vmatprep.subr.mxu0 0.0
        %623 = vmatpush1.msra.mxu0 0.0
        %624 = vmatprep.subr.mxu0 0.0
        %625 = vmatpush1.msra.mxu0 0.0
        %626 = vmatprep.subr.mxu0 0.0
        %627 = vmatpush1.msra.mxu0 0.0
        %628 = vmatprep.subr.mxu0 0.0
        %629 = vmatpush1.msra.mxu0 0.0
        %630 = vmatprep.subr.mxu0 0.0
        %631 = vmatpush1.msra.mxu0 0.0
        %632 = vmatprep.subr.mxu0 0.0
        %633 = vmatpush1.msra.mxu0 0.0
        %634 = vmatprep.subr.mxu0 0.0
        %635 = vmatpush1.msra.mxu0 0.0
        %636 = vmatprep.subr.mxu0 0.0
        %637 = vmatpush1.msra.mxu0 0.0
        %638 = vmatprep.subr.mxu0 0.0
        %639 = vmatpush1.msra.mxu0 0.0
        %640 = vmatprep.mubr.f32.mxu0 0.0
        %641 = vmatmul.mubr.f32.gmra.mrb[0].mxu0 %v574
        %v642 = vpop.f32.mrb[0].mxu0
        %v643 = vadd.f32 0.0, %v642
        %v644 = vpop.f32.mrb[0].mxu0
        %645 = vdwg.mxu0
        %s646 = scalar_lea.vmem [#allocation2], 4
        %647 = vst.msk [vmem:[%s646] sm:$0x3] %vm492, %v643
        %v648 = vld [vmem:[%s8] sm:$0xff]
        %649 = vrot.lane.b32.xlu0 %v415, 104
        %v650 = vpop.permute.xlu0 %649
        %v651 = vsel %vm344, %v650, 0
        %653 = vmatprep.subr.mxu0 0.0
        %654 = vmatpush1.msra.mxu0 %v648
        %655 = vmatprep.subr.mxu0 0.0
        %656 = vmatpush1.msra.mxu0 0.0
        %657 = vmatprep.subr.mxu0 0.0
        %658 = vmatpush1.msra.mxu0 0.0
        %659 = vmatprep.subr.mxu0 0.0
        %660 = vmatpush1.msra.mxu0 0.0
        %661 = vmatprep.subr.mxu0 0.0
        %662 = vmatpush1.msra.mxu0 0.0
        %663 = vmatprep.subr.mxu0 0.0
        %664 = vmatpush1.msra.mxu0 0.0
        %665 = vmatprep.subr.mxu0 0.0
        %666 = vmatpush1.msra.mxu0 0.0
        %667 = vmatprep.subr.mxu0 0.0
        %668 = vmatpush1.msra.mxu0 0.0
        %669 = vmatprep.subr.mxu0 0.0
        %670 = vmatpush1.msra.mxu0 0.0
        %671 = vmatprep.subr.mxu0 0.0
        %672 = vmatpush1.msra.mxu0 0.0
        %673 = vmatprep.subr.mxu0 0.0
        %674 = vmatpush1.msra.mxu0 0.0
        %675 = vmatprep.subr.mxu0 0.0
        %676 = vmatpush1.msra.mxu0 0.0
        %677 = vmatprep.subr.mxu0 0.0
        %678 = vmatpush1.msra.mxu0 0.0
        %679 = vmatprep.subr.mxu0 0.0
        %680 = vmatpush1.msra.mxu0 0.0
        %681 = vmatprep.subr.mxu0 0.0
        %682 = vmatpush1.msra.mxu0 0.0
        %683 = vmatprep.subr.mxu0 0.0
        %684 = vmatpush1.msra.mxu0 0.0
        %685 = vmatprep.subr.mxu0 0.0
        %686 = vmatpush1.msra.mxu0 0.0
        %687 = vmatprep.subr.mxu0 0.0
        %688 = vmatpush1.msra.mxu0 0.0
        %689 = vmatprep.subr.mxu0 0.0
        %690 = vmatpush1.msra.mxu0 0.0
        %691 = vmatprep.subr.mxu0 0.0
        %692 = vmatpush1.msra.mxu0 0.0
        %693 = vmatprep.subr.mxu0 0.0
        %694 = vmatpush1.msra.mxu0 0.0
        %695 = vmatprep.subr.mxu0 0.0
        %696 = vmatpush1.msra.mxu0 0.0
        %697 = vmatprep.subr.mxu0 0.0
        %698 = vmatpush1.msra.mxu0 0.0
        %699 = vmatprep.subr.mxu0 0.0
        %700 = vmatpush1.msra.mxu0 0.0
        %701 = vmatprep.subr.mxu0 0.0
        %702 = vmatpush1.msra.mxu0 0.0
        %703 = vmatprep.subr.mxu0 0.0
        %704 = vmatpush1.msra.mxu0 0.0
        %705 = vmatprep.subr.mxu0 0.0
        %706 = vmatpush1.msra.mxu0 0.0
        %707 = vmatprep.subr.mxu0 0.0
        %708 = vmatpush1.msra.mxu0 0.0
        %709 = vmatprep.subr.mxu0 0.0
        %710 = vmatpush1.msra.mxu0 0.0
        %711 = vmatprep.subr.mxu0 0.0
        %712 = vmatpush1.msra.mxu0 0.0
        %713 = vmatprep.subr.mxu0 0.0
        %714 = vmatpush1.msra.mxu0 0.0
        %715 = vmatprep.subr.mxu0 0.0
        %716 = vmatpush1.msra.mxu0 0.0
        %717 = vmatprep.mubr.f32.mxu0 0.0
        %718 = vmatmul.mubr.f32.gmra.mrb[0].mxu0 %v651
        %v719 = vpop.f32.mrb[0].mxu0
        %v720 = vadd.f32 0.0, %v719
        %v721 = vpop.f32.mrb[0].mxu0
        %722 = vdwg.mxu0
        %s723 = scalar_lea.vmem [#allocation2], 6
        %724 = vst.msk [vmem:[%s723] sm:$0x3] %vm492, %v720
        %v725 = vld [vmem:[%s8] sm:$0xff]
        %726 = vrot.lane.b32.xlu0 %v415, 96
        %v727 = vpop.permute.xlu0 %726
        %v728 = vsel %vm344, %v727, 0
        %730 = vmatprep.subr.mxu0 0.0
        %731 = vmatpush1.msra.mxu0 %v725
        %732 = vmatprep.subr.mxu0 0.0
        %733 = vmatpush1.msra.mxu0 0.0
        %734 = vmatprep.subr.mxu0 0.0
        %735 = vmatpush1.msra.mxu0 0.0
        %736 = vmatprep.subr.mxu0 0.0
        %737 = vmatpush1.msra.mxu0 0.0
        %738 = vmatprep.subr.mxu0 0.0
        %739 = vmatpush1.msra.mxu0 0.0
        %740 = vmatprep.subr.mxu0 0.0
        %741 = vmatpush1.msra.mxu0 0.0
        %742 = vmatprep.subr.mxu0 0.0
        %743 = vmatpush1.msra.mxu0 0.0
        %744 = vmatprep.subr.mxu0 0.0
        %745 = vmatpush1.msra.mxu0 0.0
        %746 = vmatprep.subr.mxu0 0.0
        %747 = vmatpush1.msra.mxu0 0.0
        %748 = vmatprep.subr.mxu0 0.0
        %749 = vmatpush1.msra.mxu0 0.0
        %750 = vmatprep.subr.mxu0 0.0
        %751 = vmatpush1.msra.mxu0 0.0
        %752 = vmatprep.subr.mxu0 0.0
        %753 = vmatpush1.msra.mxu0 0.0
        %754 = vmatprep.subr.mxu0 0.0
        %755 = vmatpush1.msra.mxu0 0.0
        %756 = vmatprep.subr.mxu0 0.0
        %757 = vmatpush1.msra.mxu0 0.0
        %758 = vmatprep.subr.mxu0 0.0
        %759 = vmatpush1.msra.mxu0 0.0
        %760 = vmatprep.subr.mxu0 0.0
        %761 = vmatpush1.msra.mxu0 0.0
        %762 = vmatprep.subr.mxu0 0.0
        %763 = vmatpush1.msra.mxu0 0.0
        %764 = vmatprep.subr.mxu0 0.0
        %765 = vmatpush1.msra.mxu0 0.0
        %766 = vmatprep.subr.mxu0 0.0
        %767 = vmatpush1.msra.mxu0 0.0
        %768 = vmatprep.subr.mxu0 0.0
        %769 = vmatpush1.msra.mxu0 0.0
        %770 = vmatprep.subr.mxu0 0.0
        %771 = vmatpush1.msra.mxu0 0.0
        %772 = vmatprep.subr.mxu0 0.0
        %773 = vmatpush1.msra.mxu0 0.0
        %774 = vmatprep.subr.mxu0 0.0
        %775 = vmatpush1.msra.mxu0 0.0
        %776 = vmatprep.subr.mxu0 0.0
        %777 = vmatpush1.msra.mxu0 0.0
        %778 = vmatprep.subr.mxu0 0.0
        %779 = vmatpush1.msra.mxu0 0.0
        %780 = vmatprep.subr.mxu0 0.0
        %781 = vmatpush1.msra.mxu0 0.0
        %782 = vmatprep.subr.mxu0 0.0
        %783 = vmatpush1.msra.mxu0 0.0
        %784 = vmatprep.subr.mxu0 0.0
        %785 = vmatpush1.msra.mxu0 0.0
        %786 = vmatprep.subr.mxu0 0.0
        %787 = vmatpush1.msra.mxu0 0.0
        %788 = vmatprep.subr.mxu0 0.0
        %789 = vmatpush1.msra.mxu0 0.0
        %790 = vmatprep.subr.mxu0 0.0
        %791 = vmatpush1.msra.mxu0 0.0
        %792 = vmatprep.subr.mxu0 0.0
        %793 = vmatpush1.msra.mxu0 0.0
        %794 = vmatprep.mubr.f32.mxu0 0.0
        %795 = vmatmul.mubr.f32.gmra.mrb[0].mxu0 %v728
        %v796 = vpop.f32.mrb[0].mxu0
        %v797 = vadd.f32 0.0, %v796
        %v798 = vpop.f32.mrb[0].mxu0
        %799 = vdwg.mxu0
        %s800 = scalar_lea.vmem [#allocation2], 8
        %801 = vst.msk [vmem:[%s800] sm:$0x3] %vm492, %v797
        %v802 = vld [vmem:[%s8] sm:$0xff]
        %803 = vrot.lane.b32.xlu0 %v415, 88
        %v804 = vpop.permute.xlu0 %803
        %v805 = vsel %vm344, %v804, 0
        %807 = vmatprep.subr.mxu0 0.0
        %808 = vmatpush1.msra.mxu0 %v802
        %809 = vmatprep.subr.mxu0 0.0
        %810 = vmatpush1.msra.mxu0 0.0
        %811 = vmatprep.subr.mxu0 0.0
        %812 = vmatpush1.msra.mxu0 0.0
        %813 = vmatprep.subr.mxu0 0.0
        %814 = vmatpush1.msra.mxu0 0.0
        %815 = vmatprep.subr.mxu0 0.0
        %816 = vmatpush1.msra.mxu0 0.0
        %817 = vmatprep.subr.mxu0 0.0
        %818 = vmatpush1.msra.mxu0 0.0
        %819 = vmatprep.subr.mxu0 0.0
        %820 = vmatpush1.msra.mxu0 0.0
        %821 = vmatprep.subr.mxu0 0.0
        %822 = vmatpush1.msra.mxu0 0.0
        %823 = vmatprep.subr.mxu0 0.0
        %824 = vmatpush1.msra.mxu0 0.0
        %825 = vmatprep.subr.mxu0 0.0
        %826 = vmatpush1.msra.mxu0 0.0
        %827 = vmatprep.subr.mxu0 0.0
        %828 = vmatpush1.msra.mxu0 0.0
        %829 = vmatprep.subr.mxu0 0.0
        %830 = vmatpush1.msra.mxu0 0.0
        %831 = vmatprep.subr.mxu0 0.0
        %832 = vmatpush1.msra.mxu0 0.0
        %833 = vmatprep.subr.mxu0 0.0
        %834 = vmatpush1.msra.mxu0 0.0
        %835 = vmatprep.subr.mxu0 0.0
        %836 = vmatpush1.msra.mxu0 0.0
        %837 = vmatprep.subr.mxu0 0.0
        %838 = vmatpush1.msra.mxu0 0.0
        %839 = vmatprep.subr.mxu0 0.0
        %840 = vmatpush1.msra.mxu0 0.0
        %841 = vmatprep.subr.mxu0 0.0
        %842 = vmatpush1.msra.mxu0 0.0
        %843 = vmatprep.subr.mxu0 0.0
        %844 = vmatpush1.msra.mxu0 0.0
        %845 = vmatprep.subr.mxu0 0.0
        %846 = vmatpush1.msra.mxu0 0.0
        %847 = vmatprep.subr.mxu0 0.0
        %848 = vmatpush1.msra.mxu0 0.0
        %849 = vmatprep.subr.mxu0 0.0
        %850 = vmatpush1.msra.mxu0 0.0
        %851 = vmatprep.subr.mxu0 0.0
        %852 = vmatpush1.msra.mxu0 0.0
        %853 = vmatprep.subr.mxu0 0.0
        %854 = vmatpush1.msra.mxu0 0.0
        %855 = vmatprep.subr.mxu0 0.0
        %856 = vmatpush1.msra.mxu0 0.0
        %857 = vmatprep.subr.mxu0 0.0
        %858 = vmatpush1.msra.mxu0 0.0
        %859 = vmatprep.subr.mxu0 0.0
        %860 = vmatpush1.msra.mxu0 0.0
        %861 = vmatprep.subr.mxu0 0.0
        %862 = vmatpush1.msra.mxu0 0.0
        %863 = vmatprep.subr.mxu0 0.0
        %864 = vmatpush1.msra.mxu0 0.0
        %865 = vmatprep.subr.mxu0 0.0
        %866 = vmatpush1.msra.mxu0 0.0
        %867 = vmatprep.subr.mxu0 0.0
        %868 = vmatpush1.msra.mxu0 0.0
        %869 = vmatprep.subr.mxu0 0.0
        %870 = vmatpush1.msra.mxu0 0.0
        %871 = vmatprep.mubr.f32.mxu0 0.0
        %872 = vmatmul.mubr.f32.gmra.mrb[0].mxu0 %v805
        %v873 = vpop.f32.mrb[0].mxu0
        %v874 = vadd.f32 0.0, %v873
        %v875 = vpop.f32.mrb[0].mxu0
        %876 = vdwg.mxu0
        %s877 = scalar_lea.vmem [#allocation2], 10
        %878 = vst.msk [vmem:[%s877] sm:$0x3] %vm492, %v874
        %v879 = vld [vmem:[%s8] sm:$0xff]
        %880 = vrot.lane.b32.xlu0 %v415, 80
        %v881 = vpop.permute.xlu0 %880
        %v882 = vsel %vm344, %v881, 0
        %884 = vmatprep.subr.mxu0 0.0
        %885 = vmatpush1.msra.mxu0 %v879
        %886 = vmatprep.subr.mxu0 0.0
        %887 = vmatpush1.msra.mxu0 0.0
        %888 = vmatprep.subr.mxu0 0.0
        %889 = vmatpush1.msra.mxu0 0.0
        %890 = vmatprep.subr.mxu0 0.0
        %891 = vmatpush1.msra.mxu0 0.0
        %892 = vmatprep.subr.mxu0 0.0
        %893 = vmatpush1.msra.mxu0 0.0
        %894 = vmatprep.subr.mxu0 0.0
        %895 = vmatpush1.msra.mxu0 0.0
        %896 = vmatprep.subr.mxu0 0.0
        %897 = vmatpush1.msra.mxu0 0.0
        %898 = vmatprep.subr.mxu0 0.0
        %899 = vmatpush1.msra.mxu0 0.0
        %900 = vmatprep.subr.mxu0 0.0
        %901 = vmatpush1.msra.mxu0 0.0
        %902 = vmatprep.subr.mxu0 0.0
        %903 = vmatpush1.msra.mxu0 0.0
        %904 = vmatprep.subr.mxu0 0.0
        %905 = vmatpush1.msra.mxu0 0.0
        %906 = vmatprep.subr.mxu0 0.0
        %907 = vmatpush1.msra.mxu0 0.0
        %908 = vmatprep.subr.mxu0 0.0
        %909 = vmatpush1.msra.mxu0 0.0
        %910 = vmatprep.subr.mxu0 0.0
        %911 = vmatpush1.msra.mxu0 0.0
        %912 = vmatprep.subr.mxu0 0.0
        %913 = vmatpush1.msra.mxu0 0.0
        %914 = vmatprep.subr.mxu0 0.0
        %915 = vmatpush1.msra.mxu0 0.0
        %916 = vmatprep.subr.mxu0 0.0
        %917 = vmatpush1.msra.mxu0 0.0
        %918 = vmatprep.subr.mxu0 0.0
        %919 = vmatpush1.msra.mxu0 0.0
        %920 = vmatprep.subr.mxu0 0.0
        %921 = vmatpush1.msra.mxu0 0.0
        %922 = vmatprep.subr.mxu0 0.0
        %923 = vmatpush1.msra.mxu0 0.0
        %924 = vmatprep.subr.mxu0 0.0
        %925 = vmatpush1.msra.mxu0 0.0
        %926 = vmatprep.subr.mxu0 0.0
        %927 = vmatpush1.msra.mxu0 0.0
        %928 = vmatprep.subr.mxu0 0.0
        %929 = vmatpush1.msra.mxu0 0.0
        %930 = vmatprep.subr.mxu0 0.0
        %931 = vmatpush1.msra.mxu0 0.0
        %932 = vmatprep.subr.mxu0 0.0
        %933 = vmatpush1.msra.mxu0 0.0
        %934 = vmatprep.subr.mxu0 0.0
        %935 = vmatpush1.msra.mxu0 0.0
        %936 = vmatprep.subr.mxu0 0.0
        %937 = vmatpush1.msra.mxu0 0.0
        %938 = vmatprep.subr.mxu0 0.0
        %939 = vmatpush1.msra.mxu0 0.0
        %940 = vmatprep.subr.mxu0 0.0
        %941 = vmatpush1.msra.mxu0 0.0
        %942 = vmatprep.subr.mxu0 0.0
        %943 = vmatpush1.msra.mxu0 0.0
        %944 = vmatprep.subr.mxu0 0.0
        %945 = vmatpush1.msra.mxu0 0.0
        %946 = vmatprep.subr.mxu0 0.0
        %947 = vmatpush1.msra.mxu0 0.0
        %948 = vmatprep.mubr.f32.mxu0 0.0
        %949 = vmatmul.mubr.f32.gmra.mrb[0].mxu0 %v882
        %v950 = vpop.f32.mrb[0].mxu0
        %v951 = vadd.f32 0.0, %v950
        %v952 = vpop.f32.mrb[0].mxu0
        %953 = vdwg.mxu0
        %s954 = scalar_lea.vmem [#allocation2], 12
        %955 = vst.msk [vmem:[%s954] sm:$0x3] %vm492, %v951
        %v956 = vld [vmem:[%s8] sm:$0xff]
        %957 = vrot.lane.b32.xlu0 %v415, 72
        %v958 = vpop.permute.xlu0 %957
        %v959 = vsel %vm344, %v958, 0
        %961 = vmatprep.subr.mxu0 0.0
        %962 = vmatpush1.msra.mxu0 %v956
        %963 = vmatprep.subr.mxu0 0.0
        %964 = vmatpush1.msra.mxu0 0.0
        %965 = vmatprep.subr.mxu0 0.0
        %966 = vmatpush1.msra.mxu0 0.0
        %967 = vmatprep.subr.mxu0 0.0
        %968 = vmatpush1.msra.mxu0 0.0
        %969 = vmatprep.subr.mxu0 0.0
        %970 = vmatpush1.msra.mxu0 0.0
        %971 = vmatprep.subr.mxu0 0.0
        %972 = vmatpush1.msra.mxu0 0.0
        %973 = vmatprep.subr.mxu0 0.0
        %974 = vmatpush1.msra.mxu0 0.0
        %975 = vmatprep.subr.mxu0 0.0
        %976 = vmatpush1.msra.mxu0 0.0
        %977 = vmatprep.subr.mxu0 0.0
        %978 = vmatpush1.msra.mxu0 0.0
        %979 = vmatprep.subr.mxu0 0.0
        %980 = vmatpush1.msra.mxu0 0.0
        %981 = vmatprep.subr.mxu0 0.0
        %982 = vmatpush1.msra.mxu0 0.0
        %983 = vmatprep.subr.mxu0 0.0
        %984 = vmatpush1.msra.mxu0 0.0
        %985 = vmatprep.subr.mxu0 0.0
        %986 = vmatpush1.msra.mxu0 0.0
        %987 = vmatprep.subr.mxu0 0.0
        %988 = vmatpush1.msra.mxu0 0.0
        %989 = vmatprep.subr.mxu0 0.0
        %990 = vmatpush1.msra.mxu0 0.0
        %991 = vmatprep.subr.mxu0 0.0
        %992 = vmatpush1.msra.mxu0 0.0
        %993 = vmatprep.subr.mxu0 0.0
        %994 = vmatpush1.msra.mxu0 0.0
        %995 = vmatprep.subr.mxu0 0.0
        %996 = vmatpush1.msra.mxu0 0.0
        %997 = vmatprep.subr.mxu0 0.0
        %998 = vmatpush1.msra.mxu0 0.0
        %999 = vmatprep.subr.mxu0 0.0
        %1000 = vmatpush1.msra.mxu0 0.0
        %1001 = vmatprep.subr.mxu0 0.0
        %1002 = vmatpush1.msra.mxu0 0.0
        %1003 = vmatprep.subr.mxu0 0.0
        %1004 = vmatpush1.msra.mxu0 0.0
        %1005 = vmatprep.subr.mxu0 0.0
        %1006 = vmatpush1.msra.mxu0 0.0
        %1007 = vmatprep.subr.mxu0 0.0
        %1008 = vmatpush1.msra.mxu0 0.0
        %1009 = vmatprep.subr.mxu0 0.0
        %1010 = vmatpush1.msra.mxu0 0.0
        %1011 = vmatprep.subr.mxu0 0.0
        %1012 = vmatpush1.msra.mxu0 0.0
        %1013 = vmatprep.subr.mxu0 0.0
        %1014 = vmatpush1.msra.mxu0 0.0
        %1015 = vmatprep.subr.mxu0 0.0
        %1016 = vmatpush1.msra.mxu0 0.0
        %1017 = vmatprep.subr.mxu0 0.0
        %1018 = vmatpush1.msra.mxu0 0.0
        %1019 = vmatprep.subr.mxu0 0.0
        %1020 = vmatpush1.msra.mxu0 0.0
        %1021 = vmatprep.subr.mxu0 0.0
        %1022 = vmatpush1.msra.mxu0 0.0
        %1023 = vmatprep.subr.mxu0 0.0
        %1024 = vmatpush1.msra.mxu0 0.0
        %1025 = vmatprep.mubr.f32.mxu0 0.0
        %1026 = vmatmul.mubr.f32.gmra.mrb[0].mxu0 %v959
        %v1027 = vpop.f32.mrb[0].mxu0
        %v1028 = vadd.f32 0.0, %v1027
        %v1029 = vpop.f32.mrb[0].mxu0
        %1030 = vdwg.mxu0
        %s1031 = scalar_lea.vmem [#allocation2], 14
        %1032 = vst.msk [vmem:[%s1031] sm:$0x3] %vm492, %v1028
        %s1033 = smul.u32 %s46, 8
        %s1034 = sld [smem:[#allocation5 + %s1033]]
        %s1035 = sadd.s32 %s1034, 1
        %p1036 = scmp.lt.s32.totalorder %s1035, 7
        %s1037 = scalar_select %p1036, %s1035, 7
        %s1038 = sld [smem:[#allocation6 + %s1033]]
        %s1039 = ssub.f32 1.0, %s1038
        %s1040 = smul.u32 %s1034, 2
        %s1041 = scalar_lea.vmem [#allocation2], %s1040
        %v1042 = vld [vmem:[%s1041] sm:$0x3]
        %v1043 = vstv %s1039
        %v1044 = vmul.f32 %v1043, %v1042
        %s1045 = smul.u32 %s1037, 2
        %s1046 = scalar_lea.vmem [#allocation2], %s1045
        %v1047 = vld [vmem:[%s1046] sm:$0x3]
        %v1048 = vstv %s1038
        %v1049 = vmul.f32 %v1048, %v1047
        %v1050 = vadd.f32 %v1044, %v1049
        %1051 = vst.msk [vmem:[#allocation3] sm:$0x3] %vm492, %v1050
        %s1052 = sadd.s32 %s1033, 1
        %s1053 = sld [smem:[#allocation5 + %s1052]]
        %s1054 = sadd.s32 %s1053, 1
        %p1055 = scmp.lt.s32.totalorder %s1054, 7
        %s1056 = scalar_select %p1055, %s1054, 7
        %s1057 = sld [smem:[#allocation6 + %s1052]]
        %s1058 = ssub.f32 1.0, %s1057
        %s1059 = smul.u32 %s1053, 2
        %s1060 = scalar_lea.vmem [#allocation2], %s1059
        %v1061 = vld [vmem:[%s1060] sm:$0x3]
        %v1062 = vstv %s1058
        %v1063 = vmul.f32 %v1062, %v1061
        %s1064 = smul.u32 %s1056, 2
        %s1065 = scalar_lea.vmem [#allocation2], %s1064
        %v1066 = vld [vmem:[%s1065] sm:$0x3]
        %v1067 = vstv %s1057
        %v1068 = vmul.f32 %v1067, %v1066
        %v1069 = vadd.f32 %v1063, %v1068
        %1071 = vrot.lane.b32.xlu0 %v1069, 16
        %v1072 = vpop.permute.xlu0 %1071
        %vm1074 = vcmask 255104
        %1075 = vst.msk [vmem:[#allocation3] sm:$0x3] %vm1074, %v1072
        %s1076 = sadd.s32 %s1033, 2
        %s1077 = sld [smem:[#allocation5 + %s1076]]
        %s1078 = sadd.s32 %s1077, 1
        %p1079 = scmp.lt.s32.totalorder %s1078, 7
        %s1080 = scalar_select %p1079, %s1078, 7
        %s1081 = sld [smem:[#allocation6 + %s1076]]
        %s1082 = ssub.f32 1.0, %s1081
        %s1083 = smul.u32 %s1077, 2
        %s1084 = scalar_lea.vmem [#allocation2], %s1083
        %v1085 = vld [vmem:[%s1084] sm:$0x3]
        %v1086 = vstv %s1082
        %v1087 = vmul.f32 %v1086, %v1085
        %s1088 = smul.u32 %s1080, 2
        %s1089 = scalar_lea.vmem [#allocation2], %s1088
        %v1090 = vld [vmem:[%s1089] sm:$0x3]
        %v1091 = vstv %s1081
        %v1092 = vmul.f32 %v1091, %v1090
        %v1093 = vadd.f32 %v1087, %v1092
        %1095 = vrot.lane.b32.xlu0 %v1093, 32
        %v1096 = vpop.permute.xlu0 %1095
        %vm1098 = vcmask 386304
        %1099 = vst.msk [vmem:[#allocation3] sm:$0x3] %vm1098, %v1096
        %s1100 = sadd.s32 %s1033, 3
        %s1101 = sld [smem:[#allocation5 + %s1100]]
        %s1102 = sadd.s32 %s1101, 1
        %p1103 = scmp.lt.s32.totalorder %s1102, 7
        %s1104 = scalar_select %p1103, %s1102, 7
        %s1105 = sld [smem:[#allocation6 + %s1100]]
        %s1106 = ssub.f32 1.0, %s1105
        %s1107 = smul.u32 %s1101, 2
        %s1108 = scalar_lea.vmem [#allocation2], %s1107
        %v1109 = vld [vmem:[%s1108] sm:$0x3]
        %v1110 = vstv %s1106
        %v1111 = vmul.f32 %v1110, %v1109
        %s1112 = smul.u32 %s1104, 2
        %s1113 = scalar_lea.vmem [#allocation2], %s1112
        %v1114 = vld [vmem:[%s1113] sm:$0x3]
        %v1115 = vstv %s1105
        %v1116 = vmul.f32 %v1115, %v1114
        %v1117 = vadd.f32 %v1111, %v1116
        %1119 = vrot.lane.b32.xlu0 %v1117, 48
        %v1120 = vpop.permute.xlu0 %1119
        %vm1122 = vcmask 517504
        %1123 = vst.msk [vmem:[#allocation3] sm:$0x3] %vm1122, %v1120
        %s1124 = sadd.s32 %s1033, 4
        %s1125 = sld [smem:[#allocation5 + %s1124]]
        %s1126 = sadd.s32 %s1125, 1
        %p1127 = scmp.lt.s32.totalorder %s1126, 7
        %s1128 = scalar_select %p1127, %s1126, 7
        %s1129 = sld [smem:[#allocation6 + %s1124]]
        %s1130 = ssub.f32 1.0, %s1129
        %s1131 = smul.u32 %s1125, 2
        %s1132 = scalar_lea.vmem [#allocation2], %s1131
        %v1133 = vld [vmem:[%s1132] sm:$0x3]
        %v1134 = vstv %s1130
        %v1135 = vmul.f32 %v1134, %v1133
        %s1136 = smul.u32 %s1128, 2
        %s1137 = scalar_lea.vmem [#allocation2], %s1136
        %v1138 = vld [vmem:[%s1137] sm:$0x3]
        %v1139 = vstv %s1129
        %v1140 = vmul.f32 %v1139, %v1138
        %v1141 = vadd.f32 %v1135, %v1140
        %1143 = vrot.lane.b32.xlu0 %v1141, 64
        %v1144 = vpop.permute.xlu0 %1143
        %vm1146 = vcmask 648704
        %1147 = vst.msk [vmem:[#allocation3] sm:$0x3] %vm1146, %v1144
        %s1148 = sadd.s32 %s1033, 5
        %s1149 = sld [smem:[#allocation5 + %s1148]]
        %s1150 = sadd.s32 %s1149, 1
        %p1151 = scmp.lt.s32.totalorder %s1150, 7
        %s1152 = scalar_select %p1151, %s1150, 7
        %s1153 = sld [smem:[#allocation6 + %s1148]]
        %s1154 = ssub.f32 1.0, %s1153
        %s1155 = smul.u32 %s1149, 2
        %s1156 = scalar_lea.vmem [#allocation2], %s1155
        %v1157 = vld [vmem:[%s1156] sm:$0x3]
        %v1158 = vstv %s1154
        %v1159 = vmul.f32 %v1158, %v1157
        %s1160 = smul.u32 %s1152, 2
        %s1161 = scalar_lea.vmem [#allocation2], %s1160
        %v1162 = vld [vmem:[%s1161] sm:$0x3]
        %v1163 = vstv %s1153
        %v1164 = vmul.f32 %v1163, %v1162
        %v1165 = vadd.f32 %v1159, %v1164
        %1167 = vrot.lane.b32.xlu0 %v1165, 80
        %v1168 = vpop.permute.xlu0 %1167
        %vm1170 = vcmask 779904
        %1171 = vst.msk [vmem:[#allocation3] sm:$0x3] %vm1170, %v1168
        %s1172 = sadd.s32 %s1033, 6
        %s1173 = sld [smem:[#allocation5 + %s1172]]
        %s1174 = sadd.s32 %s1173, 1
        %p1175 = scmp.lt.s32.totalorder %s1174, 7
        %s1176 = scalar_select %p1175, %s1174, 7
        %s1177 = sld [smem:[#allocation6 + %s1172]]
        %s1178 = ssub.f32 1.0, %s1177
        %s1179 = smul.u32 %s1173, 2
        %s1180 = scalar_lea.vmem [#allocation2], %s1179
        %v1181 = vld [vmem:[%s1180] sm:$0x3]
        %v1182 = vstv %s1178
        %v1183 = vmul.f32 %v1182, %v1181
        %s1184 = smul.u32 %s1176, 2
        %s1185 = scalar_lea.vmem [#allocation2], %s1184
        %v1186 = vld [vmem:[%s1185] sm:$0x3]
        %v1187 = vstv %s1177
        %v1188 = vmul.f32 %v1187, %v1186
        %v1189 = vadd.f32 %v1183, %v1188
        %1191 = vrot.lane.b32.xlu0 %v1189, 96
        %v1192 = vpop.permute.xlu0 %1191
        %vm1194 = vcmask 911104
        %1195 = vst.msk [vmem:[#allocation3] sm:$0x3] %vm1194, %v1192
        %s1196 = sadd.s32 %s1033, 7
        %s1197 = sld [smem:[#allocation5 + %s1196]]
        %s1198 = sadd.s32 %s1197, 1
        %p1199 = scmp.lt.s32.totalorder %s1198, 7
        %s1200 = scalar_select %p1199, %s1198, 7
        %s1201 = sld [smem:[#allocation6 + %s1196]]
        %s1202 = ssub.f32 1.0, %s1201
        %s1203 = smul.u32 %s1197, 2
        %s1204 = scalar_lea.vmem [#allocation2], %s1203
        %v1205 = vld [vmem:[%s1204] sm:$0x3]
        %v1206 = vstv %s1202
        %v1207 = vmul.f32 %v1206, %v1205
        %s1208 = smul.u32 %s1200, 2
        %s1209 = scalar_lea.vmem [#allocation2], %s1208
        %v1210 = vld [vmem:[%s1209] sm:$0x3]
        %v1211 = vstv %s1201
        %v1212 = vmul.f32 %v1211, %v1210
        %v1213 = vadd.f32 %v1207, %v1212
        %1215 = vrot.lane.b32.xlu0 %v1213, 112
        %v1216 = vpop.permute.xlu0 %1215
        %vm1218 = vcmask 1042304
        %1219 = vst.msk [vmem:[#allocation3] sm:$0x3] %vm1218, %v1216
        %v1220 = vld [vmem:[#allocation3] sm:$0x3]
        %vm1221 = vcmask 31744
        %v1223 = vsel %vm1221, %v341, 0
        %vm1225 = vcmask 1043456
        %v1227 = vsel %vm1225, %v340, 0
        %1229 = vmatprep.subr.mxu0 0.0
        %1230 = vmatpush1.msra.mxu0 %v1227
        %1231 = vmatprep.subr.mxu0 0.0
        %1232 = vmatpush1.msra.mxu0 0.0
        %1233 = vmatprep.subr.mxu0 0.0
        %1234 = vmatpush1.msra.mxu0 0.0
        %1235 = vmatprep.subr.mxu0 0.0
        %1236 = vmatpush1.msra.mxu0 0.0
        %1237 = vmatprep.subr.mxu0 0.0
        %1238 = vmatpush1.msra.mxu0 0.0
        %1239 = vmatprep.subr.mxu0 0.0
        %1240 = vmatpush1.msra.mxu0 0.0
        %1241 = vmatprep.subr.mxu0 0.0
        %1242 = vmatpush1.msra.mxu0 0.0
        %1243 = vmatprep.subr.mxu0 0.0
        %1244 = vmatpush1.msra.mxu0 0.0
        %1245 = vmatprep.subr.mxu0 0.0
        %1246 = vmatpush1.msra.mxu0 0.0
        %1247 = vmatprep.subr.mxu0 0.0
        %1248 = vmatpush1.msra.mxu0 0.0
        %1249 = vmatprep.subr.mxu0 0.0
        %1250 = vmatpush1.msra.mxu0 0.0
        %1251 = vmatprep.subr.mxu0 0.0
        %1252 = vmatpush1.msra.mxu0 0.0
        %1253 = vmatprep.subr.mxu0 0.0
        %1254 = vmatpush1.msra.mxu0 0.0
        %1255 = vmatprep.subr.mxu0 0.0
        %1256 = vmatpush1.msra.mxu0 0.0
        %1257 = vmatprep.subr.mxu0 0.0
        %1258 = vmatpush1.msra.mxu0 0.0
        %1259 = vmatprep.subr.mxu0 0.0
        %1260 = vmatpush1.msra.mxu0 0.0
        %1261 = vmatprep.subr.mxu0 0.0
        %1262 = vmatpush1.msra.mxu0 0.0
        %1263 = vmatprep.subr.mxu0 0.0
        %1264 = vmatpush1.msra.mxu0 0.0
        %1265 = vmatprep.subr.mxu0 0.0
        %1266 = vmatpush1.msra.mxu0 0.0
        %1267 = vmatprep.subr.mxu0 0.0
        %1268 = vmatpush1.msra.mxu0 0.0
        %1269 = vmatprep.subr.mxu0 0.0
        %1270 = vmatpush1.msra.mxu0 0.0
        %1271 = vmatprep.subr.mxu0 0.0
        %1272 = vmatpush1.msra.mxu0 0.0
        %1273 = vmatprep.subr.mxu0 0.0
        %1274 = vmatpush1.msra.mxu0 0.0
        %1275 = vmatprep.subr.mxu0 0.0
        %1276 = vmatpush1.msra.mxu0 0.0
        %1277 = vmatprep.subr.mxu0 0.0
        %1278 = vmatpush1.msra.mxu0 0.0
        %1279 = vmatprep.subr.mxu0 0.0
        %1280 = vmatpush1.msra.mxu0 0.0
        %1281 = vmatprep.subr.mxu0 0.0
        %1282 = vmatpush1.msra.mxu0 0.0
        %1283 = vmatprep.subr.mxu0 0.0
        %1284 = vmatpush1.msra.mxu0 0.0
        %1285 = vmatprep.subr.mxu0 0.0
        %1286 = vmatpush1.msra.mxu0 0.0
        %1287 = vmatprep.subr.mxu0 0.0
        %1288 = vmatpush1.msra.mxu0 0.0
        %1289 = vmatprep.subr.mxu0 0.0
        %1290 = vmatpush1.msra.mxu0 0.0
        %1291 = vmatprep.subr.mxu0 0.0
        %1292 = vmatpush1.msra.mxu0 0.0
        %1293 = vmatprep.mubr.f32.mxu0 0.0
        %1294 = vmatmul.mubr.f32.gmra.mrb[0].mxu0 %v1223
        %v1295 = vpop.f32.mrb[0].mxu0
        %v1296 = vadd.f32 %v1220, %v1295
        %v1297 = vpop.f32.mrb[0].mxu0
        %1298 = vdwg.mxu0
        %v1299 = vmax.f32 %v1296, 0.0
        %s1300 = sld [smem:[#allocation8]]
        %s1301 = sld [smem:[#allocation7]]
        %v1302 = vstv %s1301
        %v1303 = vmul.f32 %v1302, %v1299
        %v1304 = vstv %s1300
        %v1305 = vadd.f32 %v1304, %v1303
        %s1306 = sld [smem:[#allocation7 + $0x1]]
        %v1307 = vstv %s1306
        %v1308 = vmul.f32 %v1307, %v1299
        %v1310 = vrot.slane %v1308, 1
        %v1312 = vadd.f32 %v1305, %v1310
        %v1313 = vxor.u32 %v1312, 2147483648
        %v1314 = vmul.f32 %v1313, 1.442695
        %v1315 = vpow.pop %v1314
        %v1316 = vadd.f32 %v1315, 1.0
        %v1317 = vrcp.pop %v1316
        %v1318 = vmul.f32 1.0, %v1317
        %1319 = vst [vmem:[%s335] sm:$0x1] %v1318
        %v1320 = vlaneseq
        %v1321 = vshrl.u32 %v1320, 7
        %v1322 = vsub.s32 0, %v1321
        %v1323 = vrot.slane %v1318, %v1322
        %v1324 = vmul.f32 %v1323, %v340
        %1325 = vst [vmem:[%s329] sm:$0xf] %v1324
        %s1326 = sand.u32 %s180, 1
        %s1327 = scalar_lea.sflag [#allocation11], %s1326
        %s1328 = sand.u32 %s180, 1
        %s1329 = smul.addr %s1328, 4
        %s1330 = scalar_lea.vmem [#allocation14], %s1329
        %s1331 = sand.u32 %s208, 1
        %s1332 = scalar_lea.sflag [#allocation16], %s1331
        %s1333 = sand.u32 %s208, 1
        %s1334 = scalar_lea.vmem [#allocation15], %s1333
        // Predicated region
        $region49: #{tpu_custom_call.1} parent=39 // pred_check
          %p1335 = pneg %p190
        $region50: #{tpu_custom_call.1} parent=39 // pred_check_branch
          %1337 = sbr.rel (%p1335) target = $region52
        $region51: #{tpu_custom_call.1} parent=39 // pred_region
          %s1339 = ssub.s32 64, 64
          %1340 = vsyncadd %s1327, %s1339
          %s1341 = smul.addr %s45, 2
          %s1342 = sadd.s32 %s46, %s1341
          %s1343 = smul.addr %s1342, 64
          %s1344 = scalar_lea.hbm %s9, %s1343
          %s1346 = sshll.u32 %s1330, 4
          %s1347 = int_to_ptr.vmem [resolvable:$true] %s1346
          %1349 = dma.vmem_to_hbm [thread:$0]  %s1347, 64, %s1344, %s1327
        $region52: #{tpu_custom_call.1} parent=39 // pred_fallthru
          _
        // Predicated region
        $region53: #{tpu_custom_call.1} parent=39 // pred_check
          %p1350 = pneg %p218
        $region54: #{tpu_custom_call.1} parent=39 // pred_check_branch
          %1352 = sbr.rel (%p1350) target = $region56
        $region55: #{tpu_custom_call.1} parent=39 // pred_region
          %s1354 = ssub.s32 16, 16
          %1355 = vsyncadd %s1332, %s1354
          %s1356 = smul.addr %s45, 2
          %s1357 = sadd.s32 %s46, %s1356
          %s1358 = smul.addr %s1357, 16
          %s1359 = scalar_lea.hbm %s10, %s1358
          %s1361 = sshll.u32 %s1334, 4
          %s1362 = int_to_ptr.vmem [resolvable:$true] %s1361
          %1364 = dma.vmem_to_hbm [thread:$0]  %s1362, 16, %s1359, %s1332
        $region56: #{tpu_custom_call.1} parent=39 // pred_fallthru
          _
      $region40: #{tpu_custom_call.1} parent=5 // pred_fallthru
        _
      %p1365 = scmp.le.s32.totalorder 2, %s36
      // Predicated region
      $region57: #{tpu_custom_call.1} parent=5 // pred_check
        %p1366 = pneg %p1365
      $region58: #{tpu_custom_call.1} parent=5 // pred_check_branch
        %1368 = sbr.rel (%p1366) target = $region60
      $region59: #{tpu_custom_call.1} parent=5 // pred_region
        %s1369 = ssub.s32 %s36, 2
        // Predicated region
        $region61: #{tpu_custom_call.1} parent=59 // pred_check
          %p1370 = pneg %p196
        $region62: #{tpu_custom_call.1} parent=59 // pred_check_branch
          %1372 = sbr.rel (%p1370) target = $region64
        $region63: #{tpu_custom_call.1} parent=59 // pred_region
          %s1373 = sand.u32 %s181, 1
          %s1374 = scalar_lea.sflag [#allocation11], %s1373
          %s1375 = sand.u32 %s181, 1
          %s1376 = smul.addr %s1375, 4
          %s1377 = scalar_lea.vmem [#allocation14], %s1376
          %1378 = dma.done %s1374, 64
        $region64: #{tpu_custom_call.1} parent=59 // pred_fallthru
          _
        // Predicated region
        $region65: #{tpu_custom_call.1} parent=59 // pred_check
          %p1379 = pneg %p224
        $region66: #{tpu_custom_call.1} parent=59 // pred_check_branch
          %1381 = sbr.rel (%p1379) target = $region68
        $region67: #{tpu_custom_call.1} parent=59 // pred_region
          %s1382 = sand.u32 %s209, 1
          %s1383 = scalar_lea.sflag [#allocation16], %s1382
          %s1384 = sand.u32 %s209, 1
          %s1385 = scalar_lea.vmem [#allocation15], %s1384
          %1386 = dma.done %s1383, 16
        $region68: #{tpu_custom_call.1} parent=59 // pred_fallthru
          _
      $region60: #{tpu_custom_call.1} parent=5 // pred_fallthru
        _
    $region6: #{tpu_custom_call.1} parent=1 // loop_footer
      %s40 = sadd.s32 1, %s36
    $region7: #{tpu_custom_call.1} parent=1 // loop_footer_branch
      %35 = sbr.rel target = $region3
    $region8: #{tpu_custom_call.1} parent=1 // loop_exit
      _
    %1387 = vsyncpa [#allocation10], 1
    %s1388 = scalar_lea.sflag [#allocation10], 1
    %1389 = vsyncpa %s1388, 1
    %1390 = vsyncpa [#allocation13], 1
    %1391 = vsyncpa [#allocation11], 1
    %s1392 = scalar_lea.sflag [#allocation11], 1
    %1393 = vsyncpa %s1392, 1
    %1394 = vsyncpa [#allocation16], 1
    %s1395 = scalar_lea.sflag [#allocation16], 1
    %1396 = vsyncpa %s1395, 1

</llo_original>
